<compile_context>
chip_gen: v5e
topology: v5e:2x2
jax: 0.10.0
libtpu: 0.0.40
codegen_flags: <defaults>
</compile_context>

<pallas_src>
import jax
import jax.numpy as jnp
from jax.experimental import pallas as pl
from jax.experimental.pallas import tpu as pltpu

IN_F = 32          # small synthetic sizes (module default hidden=256, depth=5)
HIDDEN = 128       # multiple of 128 so every layer segment is lane-aligned
DEPTH = 5
NUM_LAYERS = DEPTH + 1
BATCH = 8          # MAML task batch -> matmul LHS has >= 8 sublanes


# ----------------------------------------------------------------------------
# Kernel
# ----------------------------------------------------------------------------
def _split_bf16(x_f32):
    """Split an f32 value into bf16 hi + bf16 lo residual (hi + lo ~ x)."""
    hi = x_f32.astype(jnp.bfloat16)
    lo = (x_f32 - hi.astype(jnp.float32)).astype(jnp.bfloat16)
    return hi, lo


def _stack_lhs3(x_f32):
    """LHS for the K-stacked bf16x3 dot: [x_hi | x_hi | x_lo]  (M, 3K)."""
    hi, lo = _split_bf16(x_f32)
    return jnp.concatenate([hi, hi, lo], axis=-1)


def modulator_kernel(z_ref, wz3_ref, b_ref, wh3_ref, out_ref):
    """z_ref:   (tm, in_f)              f32   batch tile of modulation inputs
       wz3_ref: (3*in_f, L*hidden)      bf16  z-part weights, K-stacked [hi;lo;hi]
       b_ref:   (1, L*hidden)           f32   all biases, lane-concatenated
       wh3_ref: (L-1, 3*hidden, hidden) bf16  hidden-part weights (layers 1..L)
       out_ref: (tm, L*hidden)          f32   [h0 | h1 | ... | hL] lane-dense slab

    Single K-stacked bf16x3 dot per matmul:
       [x_hi|x_hi|x_lo] @ [W_hi; W_lo; W_hi] = x_hi@W_hi + x_hi@W_lo + x_lo@W_hi
    """
    L = wh3_ref.shape[0] + 1
    H = wh3_ref.shape[2]

    # All z-dependent MXU work + biases in ONE wide matmul, off the serial chain.
    z3 = _stack_lhs3(z_ref[...])                                   # (tm, 3*in_f)
    c = jnp.dot(z3, wz3_ref[...],
                preferred_element_type=jnp.float32) + b_ref[...]   # (tm, L*H)

    # Layer 0: W_h contribution is zero -> no matmul on the critical path.
    h = jnp.maximum(c[:, 0:H], 0.0)
    out_ref[:, 0:H] = h                                            # 128-aligned store

    for i in range(1, L):                 # static unroll (small fixed depth)
        h3 = _stack_lhs3(h)                                        # (tm, 3*H)
        y = jnp.dot(h3, wh3_ref[i - 1],
                    preferred_element_type=jnp.float32)            # (tm, H)
        h = jnp.maximum(y + c[:, i * H:(i + 1) * H], 0.0)
        out_ref[:, i * H:(i + 1) * H] = h                          # 128-aligned store


# ----------------------------------------------------------------------------
# One-time parameter packing (hoisted out of the per-forward hot path)
# ----------------------------------------------------------------------------
def pack_params(weights, biases):
    """weights[i]/biases[i] in PyTorch layout (out_f, in_f_i)/(out_f,).
    Returns pre-transposed, K-stacked ([W_hi; W_lo; W_hi]) bf16 weight packs."""
    L = len(weights)
    hidden = weights[0].shape[0]

    wz = [weights[0].astype(jnp.float32).T]                  # (in_f, hidden)
    wh = []                                                  # layers 1..L only
    for i in range(1, L):
        wi = weights[i].astype(jnp.float32)
        wh.append(wi[:, :hidden].T)                          # (hidden, hidden)
        wz.append(wi[:, hidden:].T)                          # (in_f, hidden)
    wz_all = jnp.concatenate(wz, axis=1)                     # (in_f, L*hidden)
    b_all = jnp.concatenate(
        [b.astype(jnp.float32) for b in biases]).reshape(1, L * hidden)

    def k_stack3(w_f32):                 # (K, N) f32 -> (3K, N) bf16 [hi; lo; hi]
        hi = w_f32.astype(jnp.bfloat16)
        lo = (w_f32 - hi.astype(jnp.float32)).astype(jnp.bfloat16)
        return jnp.concatenate([hi, lo, hi], axis=0)

    wz3 = k_stack3(wz_all)                                    # (3*in_f, L*hidden)
    wh3 = jnp.stack([k_stack3(w) for w in wh], axis=0)        # (L-1, 3*h, h)
    return wz3, b_all, wh3


# ----------------------------------------------------------------------------
# Wrappers
# ----------------------------------------------------------------------------
def _round_up(n, m):
    return ((n + m - 1) // m) * m


def _choose_block_m(B):
    """Batch tile: multiple of 16 sublanes (bf16 packing), capped at 512, and
    ~ceil(B/2) so that when B permits, the parallel grid has >= 2 steps and
    both v7x TensorCores are used (v5e/v6e have one TC; a single tile is fine)."""
    bm = _round_up(pl.cdiv(B, 2), 16)
    return max(16, min(512, bm))


def modulator_forward_batched(zs, packed):
    """zs: (B, in_f) — B independent modulation inputs (e.g. MAML tasks).
    Returns tuple of L arrays, each (B, hidden)."""
    wz3, b_all, wh3 = packed
    L = wh3.shape[0] + 1
    hidden = wh3.shape[2]
    in_f = wz3.shape[0] // 3
    B = zs.shape[0]

    block_m = _choose_block_m(B)
    m_pad = _round_up(B, block_m)
    z_pad = jnp.zeros((m_pad, in_f), jnp.float32).at[:B, :].set(
        zs.astype(jnp.float32))

    out = pl.pallas_call(
        modulator_kernel,
        out_shape=jax.ShapeDtypeStruct((m_pad, L * hidden), jnp.float32),
        grid=(m_pad // block_m,),
        in_specs=[
            pl.BlockSpec((block_m, in_f), lambda i: (i, 0)),            # z tile
            pl.BlockSpec((3 * in_f, L * hidden), lambda i: (0, 0)),     # wz3 (resident)
            pl.BlockSpec((1, L * hidden), lambda i: (0, 0)),            # biases (resident)
            pl.BlockSpec((L - 1, 3 * hidden, hidden),
                         lambda i: (0, 0, 0)),                          # wh3 (resident)
        ],
        out_specs=pl.BlockSpec((block_m, L * hidden), lambda i: (i, 0)),
        compiler_params=pltpu.CompilerParams(
            dimension_semantics=("parallel",)),
    )(z_pad, wz3, b_all, wh3)

    out = out[:B]
    return tuple(out[:, i * hidden:(i + 1) * hidden] for i in range(L))


def modulator_forward(z, packed):
    """Original module semantics: z is (in_f,), returns tuple of (hidden,) vectors.
    (Padded to a full sublane tile internally; for true M=1 latency a plain XLA
    jit of the reference is competitive — the Pallas path targets batched use.)"""
    hiddens = modulator_forward_batched(z.reshape(1, -1), packed)
    return tuple(h[0] for h in hiddens)


# ----------------------------------------------------------------------------
# Pure-JAX reference (full f32) and init
# ----------------------------------------------------------------------------
def modulator_reference(z, weights, biases):
    x = z
    hiddens = []
    for W, b in zip(weights, biases):
        y = jnp.dot(x, W.T, precision=jax.lax.Precision.HIGHEST) + b
        h = jnp.maximum(y, 0.0)
        hiddens.append(h)
        x = jnp.concatenate([h, z], axis=0)
    return tuple(hiddens)


def init_params(key, in_f, hidden, depth):
    """Deterministic init mimicking nn.Linear default (uniform +/- 1/sqrt(fan_in))."""
    dims = [(hidden, in_f)] + [(hidden, hidden + in_f)] * depth
    weights, biases = [], []
    for out_d, in_d in dims:
        key, kw, kb = jax.random.split(key, 3)
        bound = 1.0 / jnp.sqrt(jnp.float32(in_d))
        weights.append(jax.random.uniform(kw, (out_d, in_d), jnp.float32, -bound, bound))
        biases.append(jax.random.uniform(kb, (out_d,), jnp.float32, -bound, bound))
    return weights, biases


if __name__ == "__main__":
    key = jax.random.PRNGKey(0)
    key, kz = jax.random.split(key)
    zs = jax.random.normal(kz, (BATCH, IN_F), dtype=jnp.float32)
    weights, biases = init_params(key, IN_F, HIDDEN, DEPTH)

    packed = pack_params(weights, biases)      # one-time packing, reused per call

    # Batched path (primary): B tasks at once.
    hiddens_b = jax.block_until_ready(modulator_forward_batched(zs, packed))
    # Single-z path (original module signature).
    hiddens_1 = jax.block_until_ready(modulator_forward(zs[0], packed))

    # Verify against the full-f32 reference (kernel uses bf16x3 => ~1e-4 accuracy).
    for b in range(BATCH):
        ref = modulator_reference(zs[b], weights, biases)
        for li in range(NUM_LAYERS):
            got = hiddens_b[li][b]
            assert got.shape == (HIDDEN,)
            if not jnp.allclose(got, ref[li], rtol=1e-3, atol=1e-3):
                raise AssertionError(f"batched mismatch at task {b}, layer {li}")

    ref0 = modulator_reference(zs[0], weights, biases)
    for li in range(NUM_LAYERS):
        assert hiddens_1[li].shape == (HIDDEN,)
        if not jnp.allclose(hiddens_1[li], ref0[li], rtol=1e-3, atol=1e-3):
            raise AssertionError(f"single-z mismatch at layer {li}")

    print("KERNEL_OK")
</pallas_src>

<mosaic_0001>
module attributes {stable_mosaic.version = 11 : i64} {
  func.func @modulator_kernel(%arg0: i32, %arg1: memref<16x32xf32, #tpu.memory_space<vmem>>, %arg2: memref<96x768xbf16, #tpu.memory_space<vmem>>, %arg3: memref<1x768xf32, #tpu.memory_space<vmem>>, %arg4: memref<5x384x128xbf16, #tpu.memory_space<vmem>>, %arg5: memref<16x768xf32, #tpu.memory_space<vmem>>) attributes {dimension_semantics = [#tpu.dimension_semantics<parallel>], iteration_bounds = array<i64: 1>, scalar_prefetch = 0 : i64, scratch_operands = 0 : i64, tpu.core_type = #tpu.core_type<tc>, window_params = [{transform_indices = @transform_0, window_bounds = array<i64: 16, 32>}, {pipeline_mode = #tpu.pipeline_mode<synchronous>, transform_indices = @transform_1, window_bounds = array<i64: 96, 768>}, {pipeline_mode = #tpu.pipeline_mode<synchronous>, transform_indices = @transform_2, window_bounds = array<i64: 1, 768>}, {pipeline_mode = #tpu.pipeline_mode<synchronous>, transform_indices = @transform_3, window_bounds = array<i64: 5, 384, 128>}, {transform_indices = @transform_4, window_bounds = array<i64: 16, 768>}]} {
    %c0 = arith.constant 0 : index
    %c0_0 = arith.constant 0 : index
    %0 = vector.load %arg1[%c0, %c0_0] : memref<16x32xf32, #tpu.memory_space<vmem>>, vector<16x32xf32>
    %1 = arith.truncf %0 : vector<16x32xf32> to vector<16x32xbf16>
    %2 = arith.extf %1 : vector<16x32xbf16> to vector<16x32xf32>
    %3 = arith.subf %0, %2 : vector<16x32xf32>
    %4 = arith.truncf %3 : vector<16x32xf32> to vector<16x32xbf16>
    %5 = tpu.concatenate %1, %1, %4 in 1 : vector<16x32xbf16>, vector<16x32xbf16>, vector<16x32xbf16> -> vector<16x96xbf16>
    %c0_1 = arith.constant 0 : index
    %c0_2 = arith.constant 0 : index
    %6 = vector.load %arg2[%c0_1, %c0_2] : memref<96x768xbf16, #tpu.memory_space<vmem>>, vector<96x768xbf16>
    %cst = arith.constant dense<0.000000e+00> : vector<16x768xf32>
    %7 = tpu.matmul %5, %6, %cst {dimension_numbers = #tpu.dot_dimension_numbers<[1], [0], [0], [1], [0, 0, 1, 1], [], []>} : vector<16x96xbf16>, vector<96x768xbf16>, vector<16x768xf32> -> vector<16x768xf32>
    %c0_3 = arith.constant 0 : index
    %c0_4 = arith.constant 0 : index
    %8 = vector.load %arg3[%c0_3, %c0_4] : memref<1x768xf32, #tpu.memory_space<vmem>>, vector<1x768xf32>
    %9 = vector.broadcast %8 : vector<1x768xf32> to vector<16x768xf32>
    %10 = arith.addf %7, %9 : vector<16x768xf32>
    %11 = vector.extract_strided_slice %10 {offsets = [0, 0], sizes = [16, 128], strides = [1, 1]} : vector<16x768xf32> to vector<16x128xf32>
    %cst_5 = arith.constant 0.000000e+00 : f32
    %12 = vector.broadcast %cst_5 : f32 to vector<16x128xf32>
    %13 = arith.maximumf %11, %12 : vector<16x128xf32>
    %c0_6 = arith.constant 0 : index
    %c0_7 = arith.constant 0 : index
    %14 = vector.load %arg5[%c0_6, %c0_7] : memref<16x768xf32, #tpu.memory_space<vmem>>, vector<16x128xf32>
    tpu.vector_store %arg5[%c0_6, %c0_7], %13 {strides = array<i32>} : memref<16x768xf32, #tpu.memory_space<vmem>>, vector<16x128xf32>,
    %15 = arith.truncf %13 : vector<16x128xf32> to vector<16x128xbf16>
    %16 = arith.extf %15 : vector<16x128xbf16> to vector<16x128xf32>
    %17 = arith.subf %13, %16 : vector<16x128xf32>
    %18 = arith.truncf %17 : vector<16x128xf32> to vector<16x128xbf16>
    %19 = tpu.concatenate %15, %15, %18 in 1 : vector<16x128xbf16>, vector<16x128xbf16>, vector<16x128xbf16> -> vector<16x384xbf16>
    %c0_8 = arith.constant 0 : index
    %c0_9 = arith.constant 0 : index
    %c0_10 = arith.constant 0 : index
    %20 = vector.load %arg4[%c0_8, %c0_9, %c0_10] : memref<5x384x128xbf16, #tpu.memory_space<vmem>>, vector<1x384x128xbf16>
    %21 = vector.shape_cast %20 : vector<1x384x128xbf16> to vector<384x128xbf16>
    %cst_11 = arith.constant dense<0.000000e+00> : vector<16x128xf32>
    %22 = tpu.matmul %19, %21, %cst_11 {dimension_numbers = #tpu.dot_dimension_numbers<[1], [0], [0], [1], [0, 0, 1, 1], [], []>} : vector<16x384xbf16>, vector<384x128xbf16>, vector<16x128xf32> -> vector<16x128xf32>
    %23 = vector.extract_strided_slice %10 {offsets = [0, 128], sizes = [16, 128], strides = [1, 1]} : vector<16x768xf32> to vector<16x128xf32>
    %24 = arith.addf %22, %23 : vector<16x128xf32>
    %cst_12 = arith.constant 0.000000e+00 : f32
    %25 = vector.broadcast %cst_12 : f32 to vector<16x128xf32>
    %26 = arith.maximumf %24, %25 : vector<16x128xf32>
    %c0_13 = arith.constant 0 : index
    %c128 = arith.constant 128 : index
    %27 = vector.load %arg5[%c0_13, %c128] : memref<16x768xf32, #tpu.memory_space<vmem>>, vector<16x128xf32>
    tpu.vector_store %arg5[%c0_13, %c128], %26 {strides = array<i32>} : memref<16x768xf32, #tpu.memory_space<vmem>>, vector<16x128xf32>,
    %28 = arith.truncf %26 : vector<16x128xf32> to vector<16x128xbf16>
    %29 = arith.extf %28 : vector<16x128xbf16> to vector<16x128xf32>
    %30 = arith.subf %26, %29 : vector<16x128xf32>
    %31 = arith.truncf %30 : vector<16x128xf32> to vector<16x128xbf16>
    %32 = tpu.concatenate %28, %28, %31 in 1 : vector<16x128xbf16>, vector<16x128xbf16>, vector<16x128xbf16> -> vector<16x384xbf16>
    %c1 = arith.constant 1 : index
    %c0_14 = arith.constant 0 : index
    %c0_15 = arith.constant 0 : index
    %33 = vector.load %arg4[%c1, %c0_14, %c0_15] : memref<5x384x128xbf16, #tpu.memory_space<vmem>>, vector<1x384x128xbf16>
    %34 = vector.shape_cast %33 : vector<1x384x128xbf16> to vector<384x128xbf16>
    %cst_16 = arith.constant dense<0.000000e+00> : vector<16x128xf32>
    %35 = tpu.matmul %32, %34, %cst_16 {dimension_numbers = #tpu.dot_dimension_numbers<[1], [0], [0], [1], [0, 0, 1, 1], [], []>} : vector<16x384xbf16>, vector<384x128xbf16>, vector<16x128xf32> -> vector<16x128xf32>
    %36 = vector.extract_strided_slice %10 {offsets = [0, 256], sizes = [16, 128], strides = [1, 1]} : vector<16x768xf32> to vector<16x128xf32>
    %37 = arith.addf %35, %36 : vector<16x128xf32>
    %cst_17 = arith.constant 0.000000e+00 : f32
    %38 = vector.broadcast %cst_17 : f32 to vector<16x128xf32>
    %39 = arith.maximumf %37, %38 : vector<16x128xf32>
    %c0_18 = arith.constant 0 : index
    %c256 = arith.constant 256 : index
    %40 = vector.load %arg5[%c0_18, %c256] : memref<16x768xf32, #tpu.memory_space<vmem>>, vector<16x128xf32>
    tpu.vector_store %arg5[%c0_18, %c256], %39 {strides = array<i32>} : memref<16x768xf32, #tpu.memory_space<vmem>>, vector<16x128xf32>,
    %41 = arith.truncf %39 : vector<16x128xf32> to vector<16x128xbf16>
    %42 = arith.extf %41 : vector<16x128xbf16> to vector<16x128xf32>
    %43 = arith.subf %39, %42 : vector<16x128xf32>
    %44 = arith.truncf %43 : vector<16x128xf32> to vector<16x128xbf16>
    %45 = tpu.concatenate %41, %41, %44 in 1 : vector<16x128xbf16>, vector<16x128xbf16>, vector<16x128xbf16> -> vector<16x384xbf16>
    %c2 = arith.constant 2 : index
    %c0_19 = arith.constant 0 : index
    %c0_20 = arith.constant 0 : index
    %46 = vector.load %arg4[%c2, %c0_19, %c0_20] : memref<5x384x128xbf16, #tpu.memory_space<vmem>>, vector<1x384x128xbf16>
    %47 = vector.shape_cast %46 : vector<1x384x128xbf16> to vector<384x128xbf16>
    %cst_21 = arith.constant dense<0.000000e+00> : vector<16x128xf32>
    %48 = tpu.matmul %45, %47, %cst_21 {dimension_numbers = #tpu.dot_dimension_numbers<[1], [0], [0], [1], [0, 0, 1, 1], [], []>} : vector<16x384xbf16>, vector<384x128xbf16>, vector<16x128xf32> -> vector<16x128xf32>
    %49 = vector.extract_strided_slice %10 {offsets = [0, 384], sizes = [16, 128], strides = [1, 1]} : vector<16x768xf32> to vector<16x128xf32>
    %50 = arith.addf %48, %49 : vector<16x128xf32>
    %cst_22 = arith.constant 0.000000e+00 : f32
    %51 = vector.broadcast %cst_22 : f32 to vector<16x128xf32>
    %52 = arith.maximumf %50, %51 : vector<16x128xf32>
    %c0_23 = arith.constant 0 : index
    %c384 = arith.constant 384 : index
    %53 = vector.load %arg5[%c0_23, %c384] : memref<16x768xf32, #tpu.memory_space<vmem>>, vector<16x128xf32>
    tpu.vector_store %arg5[%c0_23, %c384], %52 {strides = array<i32>} : memref<16x768xf32, #tpu.memory_space<vmem>>, vector<16x128xf32>,
    %54 = arith.truncf %52 : vector<16x128xf32> to vector<16x128xbf16>
    %55 = arith.extf %54 : vector<16x128xbf16> to vector<16x128xf32>
    %56 = arith.subf %52, %55 : vector<16x128xf32>
    %57 = arith.truncf %56 : vector<16x128xf32> to vector<16x128xbf16>
    %58 = tpu.concatenate %54, %54, %57 in 1 : vector<16x128xbf16>, vector<16x128xbf16>, vector<16x128xbf16> -> vector<16x384xbf16>
    %c3 = arith.constant 3 : index
    %c0_24 = arith.constant 0 : index
    %c0_25 = arith.constant 0 : index
    %59 = vector.load %arg4[%c3, %c0_24, %c0_25] : memref<5x384x128xbf16, #tpu.memory_space<vmem>>, vector<1x384x128xbf16>
    %60 = vector.shape_cast %59 : vector<1x384x128xbf16> to vector<384x128xbf16>
    %cst_26 = arith.constant dense<0.000000e+00> : vector<16x128xf32>
    %61 = tpu.matmul %58, %60, %cst_26 {dimension_numbers = #tpu.dot_dimension_numbers<[1], [0], [0], [1], [0, 0, 1, 1], [], []>} : vector<16x384xbf16>, vector<384x128xbf16>, vector<16x128xf32> -> vector<16x128xf32>
    %62 = vector.extract_strided_slice %10 {offsets = [0, 512], sizes = [16, 128], strides = [1, 1]} : vector<16x768xf32> to vector<16x128xf32>
    %63 = arith.addf %61, %62 : vector<16x128xf32>
    %cst_27 = arith.constant 0.000000e+00 : f32
    %64 = vector.broadcast %cst_27 : f32 to vector<16x128xf32>
    %65 = arith.maximumf %63, %64 : vector<16x128xf32>
    %c0_28 = arith.constant 0 : index
    %c512 = arith.constant 512 : index
    %66 = vector.load %arg5[%c0_28, %c512] : memref<16x768xf32, #tpu.memory_space<vmem>>, vector<16x128xf32>
    tpu.vector_store %arg5[%c0_28, %c512], %65 {strides = array<i32>} : memref<16x768xf32, #tpu.memory_space<vmem>>, vector<16x128xf32>,
    %67 = arith.truncf %65 : vector<16x128xf32> to vector<16x128xbf16>
    %68 = arith.extf %67 : vector<16x128xbf16> to vector<16x128xf32>
    %69 = arith.subf %65, %68 : vector<16x128xf32>
    %70 = arith.truncf %69 : vector<16x128xf32> to vector<16x128xbf16>
    %71 = tpu.concatenate %67, %67, %70 in 1 : vector<16x128xbf16>, vector<16x128xbf16>, vector<16x128xbf16> -> vector<16x384xbf16>
    %c4 = arith.constant 4 : index
    %c0_29 = arith.constant 0 : index
    %c0_30 = arith.constant 0 : index
    %72 = vector.load %arg4[%c4, %c0_29, %c0_30] : memref<5x384x128xbf16, #tpu.memory_space<vmem>>, vector<1x384x128xbf16>
    %73 = vector.shape_cast %72 : vector<1x384x128xbf16> to vector<384x128xbf16>
    %cst_31 = arith.constant dense<0.000000e+00> : vector<16x128xf32>
    %74 = tpu.matmul %71, %73, %cst_31 {dimension_numbers = #tpu.dot_dimension_numbers<[1], [0], [0], [1], [0, 0, 1, 1], [], []>} : vector<16x384xbf16>, vector<384x128xbf16>, vector<16x128xf32> -> vector<16x128xf32>
    %75 = vector.extract_strided_slice %10 {offsets = [0, 640], sizes = [16, 128], strides = [1, 1]} : vector<16x768xf32> to vector<16x128xf32>
    %76 = arith.addf %74, %75 : vector<16x128xf32>
    %cst_32 = arith.constant 0.000000e+00 : f32
    %77 = vector.broadcast %cst_32 : f32 to vector<16x128xf32>
    %78 = arith.maximumf %76, %77 : vector<16x128xf32>
    %c0_33 = arith.constant 0 : index
    %c640 = arith.constant 640 : index
    %79 = vector.load %arg5[%c0_33, %c640] : memref<16x768xf32, #tpu.memory_space<vmem>>, vector<16x128xf32>
    tpu.vector_store %arg5[%c0_33, %c640], %78 {strides = array<i32>} : memref<16x768xf32, #tpu.memory_space<vmem>>, vector<16x128xf32>,
    return
  }
  func.func @transform_0(%arg0: i32) -> (i32, i32) {
    %c0_i32 = arith.constant 0 : i32
    %c0_i32_0 = arith.constant 0 : i32
    return %arg0, %c0_i32 : i32, i32
  }
  func.func @transform_1(%arg0: i32) -> (i32, i32) {
    %c0_i32 = arith.constant 0 : i32
    %c0_i32_0 = arith.constant 0 : i32
    %c0_i32_1 = arith.constant 0 : i32
    return %c0_i32, %c0_i32_0 : i32, i32
  }
  func.func @transform_2(%arg0: i32) -> (i32, i32) {
    %c0_i32 = arith.constant 0 : i32
    %c0_i32_0 = arith.constant 0 : i32
    %c0_i32_1 = arith.constant 0 : i32
    return %c0_i32, %c0_i32_0 : i32, i32
  }
  func.func @transform_3(%arg0: i32) -> (i32, i32, i32) {
    %c0_i32 = arith.constant 0 : i32
    %c0_i32_0 = arith.constant 0 : i32
    %c0_i32_1 = arith.constant 0 : i32
    %c0_i32_2 = arith.constant 0 : i32
    return %c0_i32, %c0_i32_0, %c0_i32_1 : i32, i32, i32
  }
  func.func @transform_4(%arg0: i32) -> (i32, i32) {
    %c0_i32 = arith.constant 0 : i32
    %c0_i32_0 = arith.constant 0 : i32
    return %arg0, %c0_i32 : i32, i32
  }
}

</mosaic_0001>

<llo_original>
// kernel: tpu_custom_call.1
$region0: #{tpu_custom_call.1}
  #allocation0 [shape = 'u32[]', space=smem, size = 0x4, offset = 0x4, fixed_abs, tag = 'smem constant byte address 0x4 - core index']
  #allocation1 [shape = 'u32[72,128]{1,0:T(1,128)}', space=vmem, size = 0x9000, scoped, tag = 'internal scratch']
  %s0 = inlined_call_operand.hbm [shape: f32[16,32], index: 0, kind: input, shape index: {}]
  %s1 = inlined_call_operand.hbm [shape: bf16[96,768], index: 1, kind: input, shape index: {}]
  %s2 = inlined_call_operand.hbm [shape: f32[1,768], index: 2, kind: input, shape index: {}]
  %s3 = inlined_call_operand.hbm [shape: bf16[5,384,128], index: 3, kind: input, shape index: {}]
  %s4 = inlined_call_operand.hbm [shape: f32[16,768], index: 4, kind: output, shape index: {}]
  %s5 = sld [smem:[#allocation0]]
  $region42: #{tpu_custom_call.1} parent=0
    _
  %s7 = ssub.s32 1, %s5
  %s8 = scalar_select 0, %s7, %s5
  $region1: #{tpu_custom_call.1} parent=0
    #allocation2 [shape = 'u8[8192]{0}', space=vmem, size = 0x2000, scoped, tag = 'input window, operand 0, single buffered']
    #allocation3 [shape = 's32[1]{0}', space=sflag, size = 0x4, scoped, tag = 'scoped memory for tpu_custom_call.1']
    #allocation4 [shape = 's32[1]{0}', space=sflag, size = 0x4, scoped, tag = 'scoped memory for tpu_custom_call.1']
    #allocation5 [shape = 'u8[147456]{0}', space=vmem, size = 0x24000, scoped, tag = 'input window, operand 1, single buffered']
    #allocation6 [shape = 's32[1]{0}', space=sflag, size = 0x4, scoped, tag = 'scoped memory for tpu_custom_call.1']
    #allocation7 [shape = 'u8[3072]{0}', space=vmem, size = 0xc00, scoped, tag = 'input window, operand 2, single buffered']
    #allocation8 [shape = 'u8[491520]{0}', space=vmem, size = 0x78000, scoped, tag = 'input window, operand 3, single buffered']
    #allocation9 [shape = 's32[1]{0}', space=sflag, size = 0x4, scoped, tag = 'scoped memory for tpu_custom_call.1']
    #allocation10 [shape = 'u8[49152]{0}', space=vmem, size = 0xc000, scoped, tag = 'output window, operand 0, single buffered']
    %9 = vsyncpa [#allocation3], 0
    %10 = vsyncpa [#allocation6], 0
    %11 = vsyncpa [#allocation9], 0
    %12 = vsyncpa [#allocation4], 0
    // Predicated region
    $region2: #{tpu_custom_call.1} parent=1 // pred_check
      _
    $region3: #{tpu_custom_call.1} parent=1 // pred_check_branch
      %14 = sbr.rel (0) target = $region5
    $region4: #{tpu_custom_call.1} parent=1 // pred_region
      %16 = vsyncadd [#allocation3], 0
      %s17 = sshll.u32 %s0, 4
      %s18 = int_to_ptr.hbm [resolvable:$true] %s17
      %s19 = sshll.u32 [#allocation2], 4
      %s20 = int_to_ptr.vmem [resolvable:$true] %s19
      %25 = dma.hbm_to_vmem [thread:$0]  %s18, 256, %s20, [#allocation3], 128, 128, 8
    $region5: #{tpu_custom_call.1} parent=1 // pred_fallthru
      _
    // Predicated region
    $region6: #{tpu_custom_call.1} parent=1 // pred_check
      _
    $region7: #{tpu_custom_call.1} parent=1 // pred_check_branch
      %27 = sbr.rel (0) target = $region9
    $region8: #{tpu_custom_call.1} parent=1 // pred_region
      %29 = vsyncadd [#allocation6], 0
      %s30 = sshll.u32 %s1, 4
      %s31 = int_to_ptr.hbm [resolvable:$true] %s30
      %s32 = sshll.u32 [#allocation5], 4
      %s33 = int_to_ptr.vmem [resolvable:$true] %s32
      %38 = dma.hbm_to_vmem [thread:$0]  %s31, 4608, %s33, [#allocation6], 384, 384, 24
    $region9: #{tpu_custom_call.1} parent=1 // pred_fallthru
      _
    // Predicated region
    $region10: #{tpu_custom_call.1} parent=1 // pred_check
      _
    $region11: #{tpu_custom_call.1} parent=1 // pred_check_branch
      %40 = sbr.rel (0) target = $region13
    $region12: #{tpu_custom_call.1} parent=1 // pred_region
      %42 = vsyncadd [#allocation6], 0
      %s44 = sshll.u32 %s2, 4
      %s45 = int_to_ptr.hbm [resolvable:$true] %s44
      %s46 = sshll.u32 [#allocation7], 4
      %s47 = int_to_ptr.vmem [resolvable:$true] %s46
      %49 = dma.hbm_to_vmem [thread:$0]  %s45, 96, %s47, [#allocation6]
    $region13: #{tpu_custom_call.1} parent=1 // pred_fallthru
      _
    // Predicated region
    $region14: #{tpu_custom_call.1} parent=1 // pred_check
      _
    $region15: #{tpu_custom_call.1} parent=1 // pred_check_branch
      %51 = sbr.rel (0) target = $region17
    $region16: #{tpu_custom_call.1} parent=1 // pred_region
      %53 = vsyncadd [#allocation9], 0
      %s54 = sshll.u32 %s3, 4
      %s55 = int_to_ptr.hbm [resolvable:$true] %s54
      %s56 = sshll.u32 [#allocation8], 4
      %s57 = int_to_ptr.vmem [resolvable:$true] %s56
      %62 = dma.hbm_to_vmem [thread:$0]  %s55, 15360, %s57, [#allocation9], 64, 64, 4
    $region17: #{tpu_custom_call.1} parent=1 // pred_fallthru
      _
    // Predicated region
    $region18: #{tpu_custom_call.1} parent=1 // pred_check
      _
    $region19: #{tpu_custom_call.1} parent=1 // pred_check_branch
      %64 = sbr.rel (0) target = $region21
    $region20: #{tpu_custom_call.1} parent=1 // pred_region
      %66 = dma.done [#allocation3], 256
    $region21: #{tpu_custom_call.1} parent=1 // pred_fallthru
      _
    // Predicated region
    $region22: #{tpu_custom_call.1} parent=1 // pred_check
      _
    $region23: #{tpu_custom_call.1} parent=1 // pred_check_branch
      %68 = sbr.rel (0) target = $region25
    $region24: #{tpu_custom_call.1} parent=1 // pred_region
      %70 = dma.done [#allocation6], 4608
    $region25: #{tpu_custom_call.1} parent=1 // pred_fallthru
      _
    // Predicated region
    $region26: #{tpu_custom_call.1} parent=1 // pred_check
      _
    $region27: #{tpu_custom_call.1} parent=1 // pred_check_branch
      %72 = sbr.rel (0) target = $region29
    $region28: #{tpu_custom_call.1} parent=1 // pred_region
      %74 = dma.done [#allocation6], 96
    $region29: #{tpu_custom_call.1} parent=1 // pred_fallthru
      _
    // Predicated region
    $region30: #{tpu_custom_call.1} parent=1 // pred_check
      _
    $region31: #{tpu_custom_call.1} parent=1 // pred_check_branch
      %76 = sbr.rel (0) target = $region33
    $region32: #{tpu_custom_call.1} parent=1 // pred_region
      %78 = dma.done [#allocation9], 15360
    $region33: #{tpu_custom_call.1} parent=1 // pred_fallthru
      _
    %v80 = vld [vmem:[#allocation2] sm:$0xff]
    %v81 = vld [vmem:[#allocation2 + $0x8] sm:$0xff]
    %v82 = vpack.c.bf16 %v80, %v80
    %v83 = vpack.c.bf16 %v81, %v81
    %v84 = vunpack.c.l.bf16 %v82
    %v85 = vunpack.c.l.bf16 %v83
    %v86 = vsub.f32 %v80, %v84
    %v87 = vsub.f32 %v81, %v85
    %v88 = vpack.c.bf16 %v86, %v86
    %v89 = vpack.c.bf16 %v87, %v87
    %v92 = vunpack.c.l.b16 %v82
    %v93 = vunpack.c.l.b16 %v83
    %v94 = vpack.c.b16 %v93, %v92
    %95 = vrot.lane.b32.xlu0 %v94, 32
    %v96 = vpop.permute.xlu0 %95
    %v99 = vunpack.c.l.b16 %v88
    %v100 = vunpack.c.l.b16 %v89
    %v101 = vpack.c.b16 %v100, %v99
    %102 = vrot.lane.b32.xlu0 %v101, 64
    %v103 = vpop.permute.xlu0 %102
    %vm104 = vcmask 261120
    %v107 = vsel %vm104, %v94, %v96
    %vm108 = vcmask 523264
    %v110 = vsel %vm108, %v107, %v103
    %v111 = vld [vmem:[#allocation5] sm:$0xff]
    %v112 = vld [vmem:[#allocation5 + $0x8] sm:$0xff]
    %v113 = vld [vmem:[#allocation5 + $0x10] sm:$0xff]
    %v114 = vld [vmem:[#allocation5 + $0x18] sm:$0xff]
    %v115 = vld [vmem:[#allocation5 + $0x20] sm:$0xff]
    %v116 = vld [vmem:[#allocation5 + $0x28] sm:$0xff]
    %v117 = vld [vmem:[#allocation5 + $0x30] sm:$0xff]
    %v118 = vld [vmem:[#allocation5 + $0x38] sm:$0xff]
    %v119 = vld [vmem:[#allocation5 + $0x40] sm:$0xff]
    %v120 = vld [vmem:[#allocation5 + $0x48] sm:$0xff]
    %v121 = vld [vmem:[#allocation5 + $0x50] sm:$0xff]
    %v122 = vld [vmem:[#allocation5 + $0x58] sm:$0xff]
    %v123 = vld [vmem:[#allocation5 + $0x60] sm:$0xff]
    %v124 = vld [vmem:[#allocation5 + $0x68] sm:$0xff]
    %v125 = vld [vmem:[#allocation5 + $0x70] sm:$0xff]
    %v126 = vld [vmem:[#allocation5 + $0x78] sm:$0xff]
    %v127 = vld [vmem:[#allocation5 + $0x80] sm:$0xff]
    %v128 = vld [vmem:[#allocation5 + $0x88] sm:$0xff]
    %v129 = vld [vmem:[#allocation5 + $0x90] sm:$0xff]
    %v130 = vld [vmem:[#allocation5 + $0x98] sm:$0xff]
    %v131 = vld [vmem:[#allocation5 + $0xa0] sm:$0xff]
    %v132 = vld [vmem:[#allocation5 + $0xa8] sm:$0xff]
    %v133 = vld [vmem:[#allocation5 + $0xb0] sm:$0xff]
    %v134 = vld [vmem:[#allocation5 + $0xb8] sm:$0xff]
    %v135 = vld [vmem:[#allocation5 + $0xc0] sm:$0xff]
    %v136 = vld [vmem:[#allocation5 + $0xc8] sm:$0xff]
    %v137 = vld [vmem:[#allocation5 + $0xd0] sm:$0xff]
    %v138 = vld [vmem:[#allocation5 + $0xd8] sm:$0xff]
    %v139 = vld [vmem:[#allocation5 + $0xe0] sm:$0xff]
    %v140 = vld [vmem:[#allocation5 + $0xe8] sm:$0xff]
    %v141 = vld [vmem:[#allocation5 + $0xf0] sm:$0xff]
    %v142 = vld [vmem:[#allocation5 + $0xf8] sm:$0xff]
    %v143 = vld [vmem:[#allocation5 + $0x100] sm:$0xff]
    %v144 = vld [vmem:[#allocation5 + $0x108] sm:$0xff]
    %v145 = vld [vmem:[#allocation5 + $0x110] sm:$0xff]
    %v146 = vld [vmem:[#allocation5 + $0x118] sm:$0xff]
    %v147 = vld [vmem:[#allocation7] sm:$0x3f]
    %v149 = vperm.slane %v147, 0
    %v150 = vperm.slane %v147, 1
    %v151 = vperm.slane %v147, 2
    %v152 = vperm.slane %v147, 3
    %v153 = vperm.slane %v147, 4
    %v154 = vperm.slane %v147, 5
    %v197 = vunpack.c.l.b16 %v111
    %v198 = vunpack.c.h.b16 %v111
    %v199 = vunpack.c.l.b16 %v112
    %v200 = vunpack.c.h.b16 %v112
    %v201 = vunpack.c.l.b16 %v113
    %v202 = vunpack.c.h.b16 %v113
    %v203 = vunpack.c.l.b16 %v114
    %v204 = vunpack.c.h.b16 %v114
    %v205 = vunpack.c.l.b16 %v115
    %v206 = vunpack.c.h.b16 %v115
    %v207 = vunpack.c.l.b16 %v116
    %v208 = vunpack.c.h.b16 %v116
    %v209 = vunpack.c.l.b16 %v117
    %v210 = vunpack.c.h.b16 %v117
    %v211 = vunpack.c.l.b16 %v118
    %v212 = vunpack.c.h.b16 %v118
    %v213 = vunpack.c.l.b16 %v119
    %v214 = vunpack.c.h.b16 %v119
    %v215 = vunpack.c.l.b16 %v120
    %v216 = vunpack.c.h.b16 %v120
    %v217 = vunpack.c.l.b16 %v121
    %v218 = vunpack.c.h.b16 %v121
    %v219 = vunpack.c.l.b16 %v122
    %v220 = vunpack.c.h.b16 %v122
    %v221 = vunpack.c.l.b16 %v123
    %v222 = vunpack.c.h.b16 %v123
    %v223 = vunpack.c.l.b16 %v124
    %v224 = vunpack.c.h.b16 %v124
    %v225 = vunpack.c.l.b16 %v125
    %v226 = vunpack.c.h.b16 %v125
    %v227 = vunpack.c.l.b16 %v126
    %v228 = vunpack.c.h.b16 %v126
    %v229 = vunpack.c.l.b16 %v127
    %v230 = vunpack.c.h.b16 %v127
    %v231 = vunpack.c.l.b16 %v128
    %v232 = vunpack.c.h.b16 %v128
    %v233 = vunpack.c.l.b16 %v129
    %v234 = vunpack.c.h.b16 %v129
    %v235 = vunpack.c.l.b16 %v130
    %v236 = vunpack.c.h.b16 %v130
    %v237 = vunpack.c.l.b16 %v131
    %v238 = vunpack.c.h.b16 %v131
    %v239 = vunpack.c.l.b16 %v132
    %v240 = vunpack.c.h.b16 %v132
    %v241 = vunpack.c.l.b16 %v133
    %v242 = vunpack.c.h.b16 %v133
    %v243 = vunpack.c.l.b16 %v134
    %v244 = vunpack.c.h.b16 %v134
    %v245 = vunpack.c.l.b16 %v135
    %v246 = vunpack.c.h.b16 %v135
    %v247 = vunpack.c.l.b16 %v136
    %v248 = vunpack.c.h.b16 %v136
    %v249 = vunpack.c.l.b16 %v137
    %v250 = vunpack.c.h.b16 %v137
    %v251 = vunpack.c.l.b16 %v138
    %v252 = vunpack.c.h.b16 %v138
    %v253 = vunpack.c.l.b16 %v139
    %v254 = vunpack.c.h.b16 %v139
    %v255 = vunpack.c.l.b16 %v140
    %v256 = vunpack.c.h.b16 %v140
    %v257 = vunpack.c.l.b16 %v141
    %v258 = vunpack.c.h.b16 %v141
    %v259 = vunpack.c.l.b16 %v142
    %v260 = vunpack.c.h.b16 %v142
    %v261 = vunpack.c.l.b16 %v143
    %v262 = vunpack.c.h.b16 %v143
    %v263 = vunpack.c.l.b16 %v144
    %v264 = vunpack.c.h.b16 %v144
    %v265 = vunpack.c.l.b16 %v145
    %v266 = vunpack.c.h.b16 %v145
    %v267 = vunpack.c.l.b16 %v146
    %v268 = vunpack.c.h.b16 %v146
    %v269 = vpack.c.b16 %v203, %v197
    %v270 = vpack.c.b16 %v204, %v198
    %v271 = vpack.c.b16 %v205, %v199
    %v272 = vpack.c.b16 %v206, %v200
    %v273 = vpack.c.b16 %v207, %v201
    %v274 = vpack.c.b16 %v208, %v202
    %v275 = vpack.c.b16 %v215, %v209
    %v276 = vpack.c.b16 %v216, %v210
    %v277 = vpack.c.b16 %v217, %v211
    %v278 = vpack.c.b16 %v218, %v212
    %v279 = vpack.c.b16 %v219, %v213
    %v280 = vpack.c.b16 %v220, %v214
    %v281 = vpack.c.b16 %v227, %v221
    %v282 = vpack.c.b16 %v228, %v222
    %v283 = vpack.c.b16 %v229, %v223
    %v284 = vpack.c.b16 %v230, %v224
    %v285 = vpack.c.b16 %v231, %v225
    %v286 = vpack.c.b16 %v232, %v226
    %v287 = vpack.c.b16 %v239, %v233
    %v288 = vpack.c.b16 %v240, %v234
    %v289 = vpack.c.b16 %v241, %v235
    %v290 = vpack.c.b16 %v242, %v236
    %v291 = vpack.c.b16 %v243, %v237
    %v292 = vpack.c.b16 %v244, %v238
    %v293 = vpack.c.b16 %v251, %v245
    %v294 = vpack.c.b16 %v252, %v246
    %v295 = vpack.c.b16 %v253, %v247
    %v296 = vpack.c.b16 %v254, %v248
    %v297 = vpack.c.b16 %v255, %v249
    %v298 = vpack.c.b16 %v256, %v250
    %v299 = vpack.c.b16 %v263, %v257
    %v300 = vpack.c.b16 %v264, %v258
    %v301 = vpack.c.b16 %v265, %v259
    %v302 = vpack.c.b16 %v266, %v260
    %v303 = vpack.c.b16 %v267, %v261
    %v304 = vpack.c.b16 %v268, %v262
    %vm341 = vcmask 785408
    %v342 = vsel %vm341, %v110, 0
    %344 = vmatpush.bf16.msra.mxu0 0
    %345 = vmatpush.bf16.msra.mxu0 0
    %346 = vmatpush.bf16.msra.mxu0 %v299
    %347 = vmatpush.bf16.msra.mxu0 %v293
    %348 = vmatpush.bf16.msra.mxu0 %v287
    %349 = vmatpush.bf16.msra.mxu0 %v281
    %350 = vmatpush.bf16.msra.mxu0 %v275
    %351 = vmatpush.bf16.msra.mxu0 %v269
    %352 = vmatmul.bf16.gmra.mxu0 %v342
    %v353 = vpop.f32.mrf.mxu0
    %v354 = vadd.f32 %v149, %v353
    %v355 = vpop.f32.mrf.mxu0
    %v356 = vadd.f32 %v149, %v355
    %357 = vdwg.mxu0
    %358 = vmatpush.bf16.msra.mxu0 0
    %359 = vmatpush.bf16.msra.mxu0 0
    %360 = vmatpush.bf16.msra.mxu0 %v300
    %361 = vmatpush.bf16.msra.mxu0 %v294
    %362 = vmatpush.bf16.msra.mxu0 %v288
    %363 = vmatpush.bf16.msra.mxu0 %v282
    %364 = vmatpush.bf16.msra.mxu0 %v276
    %365 = vmatpush.bf16.msra.mxu0 %v270
    %366 = vmatmul.bf16.gmra.mxu0 %v342
    %v367 = vpop.f32.mrf.mxu0
    %v368 = vadd.f32 %v150, %v367
    %v369 = vpop.f32.mrf.mxu0
    %v370 = vadd.f32 %v150, %v369
    %371 = vdwg.mxu0
    %372 = vmatpush.bf16.msra.mxu0 0
    %373 = vmatpush.bf16.msra.mxu0 0
    %374 = vmatpush.bf16.msra.mxu0 %v301
    %375 = vmatpush.bf16.msra.mxu0 %v295
    %376 = vmatpush.bf16.msra.mxu0 %v289
    %377 = vmatpush.bf16.msra.mxu0 %v283
    %378 = vmatpush.bf16.msra.mxu0 %v277
    %379 = vmatpush.bf16.msra.mxu0 %v271
    %380 = vmatmul.bf16.gmra.mxu0 %v342
    %v381 = vpop.f32.mrf.mxu0
    %v382 = vadd.f32 %v151, %v381
    %v383 = vpop.f32.mrf.mxu0
    %v384 = vadd.f32 %v151, %v383
    %385 = vdwg.mxu0
    %386 = vmatpush.bf16.msra.mxu0 0
    %387 = vmatpush.bf16.msra.mxu0 0
    %388 = vmatpush.bf16.msra.mxu0 %v302
    %389 = vmatpush.bf16.msra.mxu0 %v296
    %390 = vmatpush.bf16.msra.mxu0 %v290
    %391 = vmatpush.bf16.msra.mxu0 %v284
    %392 = vmatpush.bf16.msra.mxu0 %v278
    %393 = vmatpush.bf16.msra.mxu0 %v272
    %394 = vmatmul.bf16.gmra.mxu0 %v342
    %v395 = vpop.f32.mrf.mxu0
    %v396 = vadd.f32 %v152, %v395
    %v397 = vpop.f32.mrf.mxu0
    %v398 = vadd.f32 %v152, %v397
    %399 = vdwg.mxu0
    %400 = vmatpush.bf16.msra.mxu0 0
    %401 = vmatpush.bf16.msra.mxu0 0
    %402 = vmatpush.bf16.msra.mxu0 %v303
    %403 = vmatpush.bf16.msra.mxu0 %v297
    %404 = vmatpush.bf16.msra.mxu0 %v291
    %405 = vmatpush.bf16.msra.mxu0 %v285
    %406 = vmatpush.bf16.msra.mxu0 %v279
    %407 = vmatpush.bf16.msra.mxu0 %v273
    %408 = vmatmul.bf16.gmra.mxu0 %v342
    %v409 = vpop.f32.mrf.mxu0
    %v410 = vadd.f32 %v153, %v409
    %v411 = vpop.f32.mrf.mxu0
    %v412 = vadd.f32 %v153, %v411
    %413 = vdwg.mxu0
    %414 = vmatpush.bf16.msra.mxu0 0
    %415 = vmatpush.bf16.msra.mxu0 0
    %416 = vmatpush.bf16.msra.mxu0 %v304
    %417 = vmatpush.bf16.msra.mxu0 %v298
    %418 = vmatpush.bf16.msra.mxu0 %v292
    %419 = vmatpush.bf16.msra.mxu0 %v286
    %420 = vmatpush.bf16.msra.mxu0 %v280
    %421 = vmatpush.bf16.msra.mxu0 %v274
    %422 = vmatmul.bf16.gmra.mxu0 %v342
    %v423 = vpop.f32.mrf.mxu0
    %v424 = vadd.f32 %v154, %v423
    %v425 = vpop.f32.mrf.mxu0
    %v426 = vadd.f32 %v154, %v425
    %427 = vdwg.mxu0
    %v428 = vmax.f32 %v354, 0.0
    %v429 = vmax.f32 %v356, 0.0
    %430 = vst [vmem:[#allocation10] sm:$0xff] %v428
    %431 = vst [vmem:[#allocation10 + $0x30] sm:$0xff] %v429
    %v432 = vpack.c.bf16 %v428, %v428
    %v433 = vpack.c.bf16 %v429, %v429
    %v434 = vunpack.c.l.bf16 %v432
    %v435 = vunpack.c.l.bf16 %v433
    %v436 = vsub.f32 %v428, %v434
    %v437 = vsub.f32 %v429, %v435
    %v438 = vpack.c.bf16 %v436, %v436
    %v439 = vpack.c.bf16 %v437, %v437
    %v442 = vunpack.c.l.b16 %v432
    %v443 = vunpack.c.l.b16 %v433
    %v444 = vpack.c.b16 %v443, %v442
    %v448 = vunpack.c.l.b16 %v438
    %v449 = vunpack.c.l.b16 %v439
    %v450 = vpack.c.b16 %v449, %v448
    %v452 = vld [vmem:[#allocation8] sm:$0xf]
    %v453 = vld [vmem:[#allocation8 + $0x4] sm:$0xf]
    %v454 = vld [vmem:[#allocation8 + $0x8] sm:$0xf]
    %v455 = vld [vmem:[#allocation8 + $0xc] sm:$0xf]
    %v456 = vld [vmem:[#allocation8 + $0x10] sm:$0xf]
    %v457 = vld [vmem:[#allocation8 + $0x14] sm:$0xf]
    %v458 = vld [vmem:[#allocation8 + $0x18] sm:$0xf]
    %v459 = vld [vmem:[#allocation8 + $0x1c] sm:$0xf]
    %v460 = vld [vmem:[#allocation8 + $0x20] sm:$0xf]
    %v461 = vld [vmem:[#allocation8 + $0x24] sm:$0xf]
    %v462 = vld [vmem:[#allocation8 + $0x28] sm:$0xf]
    %v463 = vld [vmem:[#allocation8 + $0x2c] sm:$0xf]
    %v464 = vld [vmem:[#allocation8 + $0x30] sm:$0xf]
    %v465 = vld [vmem:[#allocation8 + $0x34] sm:$0xf]
    %v466 = vld [vmem:[#allocation8 + $0x38] sm:$0xf]
    %v467 = vld [vmem:[#allocation8 + $0x3c] sm:$0xf]
    %v468 = vld [vmem:[#allocation8 + $0x40] sm:$0xf]
    %v469 = vld [vmem:[#allocation8 + $0x44] sm:$0xf]
    %v470 = vld [vmem:[#allocation8 + $0x48] sm:$0xf]
    %v471 = vld [vmem:[#allocation8 + $0x4c] sm:$0xf]
    %v472 = vld [vmem:[#allocation8 + $0x50] sm:$0xf]
    %v473 = vld [vmem:[#allocation8 + $0x54] sm:$0xf]
    %v474 = vld [vmem:[#allocation8 + $0x58] sm:$0xf]
    %v475 = vld [vmem:[#allocation8 + $0x5c] sm:$0xf]
    %v476 = vld [vmem:[#allocation8 + $0x60] sm:$0xf]
    %v477 = vld [vmem:[#allocation8 + $0x64] sm:$0xf]
    %v478 = vld [vmem:[#allocation8 + $0x68] sm:$0xf]
    %v479 = vld [vmem:[#allocation8 + $0x6c] sm:$0xf]
    %v480 = vld [vmem:[#allocation8 + $0x70] sm:$0xf]
    %v481 = vld [vmem:[#allocation8 + $0x74] sm:$0xf]
    %v482 = vld [vmem:[#allocation8 + $0x78] sm:$0xf]
    %v483 = vld [vmem:[#allocation8 + $0x7c] sm:$0xf]
    %v484 = vld [vmem:[#allocation8 + $0x80] sm:$0xf]
    %v485 = vld [vmem:[#allocation8 + $0x84] sm:$0xf]
    %v486 = vld [vmem:[#allocation8 + $0x88] sm:$0xf]
    %v487 = vld [vmem:[#allocation8 + $0x8c] sm:$0xf]
    %v488 = vld [vmem:[#allocation8 + $0x90] sm:$0xf]
    %v489 = vld [vmem:[#allocation8 + $0x94] sm:$0xf]
    %v490 = vld [vmem:[#allocation8 + $0x98] sm:$0xf]
    %v491 = vld [vmem:[#allocation8 + $0x9c] sm:$0xf]
    %v492 = vld [vmem:[#allocation8 + $0xa0] sm:$0xf]
    %v493 = vld [vmem:[#allocation8 + $0xa4] sm:$0xf]
    %v494 = vld [vmem:[#allocation8 + $0xa8] sm:$0xf]
    %v495 = vld [vmem:[#allocation8 + $0xac] sm:$0xf]
    %v496 = vld [vmem:[#allocation8 + $0xb0] sm:$0xf]
    %v497 = vld [vmem:[#allocation8 + $0xb4] sm:$0xf]
    %v498 = vld [vmem:[#allocation8 + $0xb8] sm:$0xf]
    %v499 = vld [vmem:[#allocation8 + $0xbc] sm:$0xf]
    %v548 = vunpack.c.l.b16 %v452
    %v549 = vunpack.c.l.b16 %v453
    %v550 = vunpack.c.l.b16 %v454
    %v551 = vunpack.c.l.b16 %v455
    %v552 = vunpack.c.l.b16 %v456
    %v553 = vunpack.c.l.b16 %v457
    %v554 = vunpack.c.l.b16 %v458
    %v555 = vunpack.c.l.b16 %v459
    %v556 = vunpack.c.l.b16 %v460
    %v557 = vunpack.c.l.b16 %v461
    %v558 = vunpack.c.l.b16 %v462
    %v559 = vunpack.c.l.b16 %v463
    %v560 = vunpack.c.l.b16 %v464
    %v561 = vunpack.c.l.b16 %v465
    %v562 = vunpack.c.l.b16 %v466
    %v563 = vunpack.c.l.b16 %v467
    %v564 = vunpack.c.l.b16 %v468
    %v565 = vunpack.c.l.b16 %v469
    %v566 = vunpack.c.l.b16 %v470
    %v567 = vunpack.c.l.b16 %v471
    %v568 = vunpack.c.l.b16 %v472
    %v569 = vunpack.c.l.b16 %v473
    %v570 = vunpack.c.l.b16 %v474
    %v571 = vunpack.c.l.b16 %v475
    %v572 = vunpack.c.l.b16 %v476
    %v573 = vunpack.c.l.b16 %v477
    %v574 = vunpack.c.l.b16 %v478
    %v575 = vunpack.c.l.b16 %v479
    %v576 = vunpack.c.l.b16 %v480
    %v577 = vunpack.c.l.b16 %v481
    %v578 = vunpack.c.l.b16 %v482
    %v579 = vunpack.c.l.b16 %v483
    %v580 = vunpack.c.l.b16 %v484
    %v581 = vunpack.c.l.b16 %v485
    %v582 = vunpack.c.l.b16 %v486
    %v583 = vunpack.c.l.b16 %v487
    %v584 = vunpack.c.l.b16 %v488
    %v585 = vunpack.c.l.b16 %v489
    %v586 = vunpack.c.l.b16 %v490
    %v587 = vunpack.c.l.b16 %v491
    %v588 = vunpack.c.l.b16 %v492
    %v589 = vunpack.c.l.b16 %v493
    %v590 = vunpack.c.l.b16 %v494
    %v591 = vunpack.c.l.b16 %v495
    %v592 = vunpack.c.l.b16 %v496
    %v593 = vunpack.c.l.b16 %v497
    %v594 = vunpack.c.l.b16 %v498
    %v595 = vunpack.c.l.b16 %v499
    %v596 = vpack.c.b16 %v549, %v548
    %v597 = vpack.c.b16 %v551, %v550
    %v598 = vpack.c.b16 %v553, %v552
    %v599 = vpack.c.b16 %v555, %v554
    %v600 = vpack.c.b16 %v557, %v556
    %v601 = vpack.c.b16 %v559, %v558
    %v602 = vpack.c.b16 %v561, %v560
    %v603 = vpack.c.b16 %v563, %v562
    %v604 = vpack.c.b16 %v565, %v564
    %v605 = vpack.c.b16 %v567, %v566
    %v606 = vpack.c.b16 %v569, %v568
    %v607 = vpack.c.b16 %v571, %v570
    %v608 = vpack.c.b16 %v573, %v572
    %v609 = vpack.c.b16 %v575, %v574
    %v610 = vpack.c.b16 %v577, %v576
    %v611 = vpack.c.b16 %v579, %v578
    %v612 = vpack.c.b16 %v581, %v580
    %v613 = vpack.c.b16 %v583, %v582
    %v614 = vpack.c.b16 %v585, %v584
    %v615 = vpack.c.b16 %v587, %v586
    %v616 = vpack.c.b16 %v589, %v588
    %v617 = vpack.c.b16 %v591, %v590
    %v618 = vpack.c.b16 %v593, %v592
    %v619 = vpack.c.b16 %v595, %v594
    %644 = vmatpush.bf16.msra.mxu0 %v603
    %645 = vmatpush.bf16.msra.mxu0 %v602
    %646 = vmatpush.bf16.msra.mxu0 %v601
    %647 = vmatpush.bf16.msra.mxu0 %v600
    %648 = vmatpush.bf16.msra.mxu0 %v599
    %649 = vmatpush.bf16.msra.mxu0 %v598
    %650 = vmatpush.bf16.msra.mxu0 %v597
    %651 = vmatpush.bf16.msra.mxu0 %v596
    %652 = vmatmul.bf16.gmra.mxu0 %v444
    %v653 = vpop.f32.mrf.mxu0
    %v654 = vadd.f32 %v368, %v653
    %v655 = vpop.f32.mrf.mxu0
    %v656 = vadd.f32 %v370, %v655
    %657 = vdwg.mxu0
    %658 = vmatpush.bf16.msra.mxu0 %v611
    %659 = vmatpush.bf16.msra.mxu0 %v610
    %660 = vmatpush.bf16.msra.mxu0 %v609
    %661 = vmatpush.bf16.msra.mxu0 %v608
    %662 = vmatpush.bf16.msra.mxu0 %v607
    %663 = vmatpush.bf16.msra.mxu0 %v606
    %664 = vmatpush.bf16.msra.mxu0 %v605
    %665 = vmatpush.bf16.msra.mxu0 %v604
    %666 = vmatmul.bf16.gmra.mxu0 %v444
    %v667 = vpop.f32.mrf.mxu0
    %v668 = vadd.f32 %v654, %v667
    %v669 = vpop.f32.mrf.mxu0
    %v670 = vadd.f32 %v656, %v669
    %671 = vdwg.mxu0
    %672 = vmatpush.bf16.msra.mxu0 %v619
    %673 = vmatpush.bf16.msra.mxu0 %v618
    %674 = vmatpush.bf16.msra.mxu0 %v617
    %675 = vmatpush.bf16.msra.mxu0 %v616
    %676 = vmatpush.bf16.msra.mxu0 %v615
    %677 = vmatpush.bf16.msra.mxu0 %v614
    %678 = vmatpush.bf16.msra.mxu0 %v613
    %679 = vmatpush.bf16.msra.mxu0 %v612
    %680 = vmatmul.bf16.gmra.mxu0 %v450
    %v681 = vpop.f32.mrf.mxu0
    %v682 = vadd.f32 %v668, %v681
    %v683 = vpop.f32.mrf.mxu0
    %v684 = vadd.f32 %v670, %v683
    %685 = vdwg.mxu0
    %v686 = vmax.f32 %v682, 0.0
    %v687 = vmax.f32 %v684, 0.0
    %688 = vst [vmem:[#allocation10 + $0x8] sm:$0xff] %v686
    %689 = vst [vmem:[#allocation10 + $0x38] sm:$0xff] %v687
    %v690 = vpack.c.bf16 %v686, %v686
    %v691 = vpack.c.bf16 %v687, %v687
    %v692 = vunpack.c.l.bf16 %v690
    %v693 = vunpack.c.l.bf16 %v691
    %v694 = vsub.f32 %v686, %v692
    %v695 = vsub.f32 %v687, %v693
    %v696 = vpack.c.bf16 %v694, %v694
    %v697 = vpack.c.bf16 %v695, %v695
    %v700 = vunpack.c.l.b16 %v690
    %v701 = vunpack.c.l.b16 %v691
    %v702 = vpack.c.b16 %v701, %v700
    %v706 = vunpack.c.l.b16 %v696
    %v707 = vunpack.c.l.b16 %v697
    %v708 = vpack.c.b16 %v707, %v706
    %s710 = scalar_lea.vmem [#allocation8], 192
    %v711 = vld [vmem:[%s710] sm:$0xf]
    %v712 = vld [vmem:[%s710 + $0x4] sm:$0xf]
    %v713 = vld [vmem:[%s710 + $0x8] sm:$0xf]
    %v714 = vld [vmem:[%s710 + $0xc] sm:$0xf]
    %v715 = vld [vmem:[%s710 + $0x10] sm:$0xf]
    %v716 = vld [vmem:[%s710 + $0x14] sm:$0xf]
    %v717 = vld [vmem:[%s710 + $0x18] sm:$0xf]
    %v718 = vld [vmem:[%s710 + $0x1c] sm:$0xf]
    %v719 = vld [vmem:[%s710 + $0x20] sm:$0xf]
    %v720 = vld [vmem:[%s710 + $0x24] sm:$0xf]
    %v721 = vld [vmem:[%s710 + $0x28] sm:$0xf]
    %v722 = vld [vmem:[%s710 + $0x2c] sm:$0xf]
    %v723 = vld [vmem:[%s710 + $0x30] sm:$0xf]
    %v724 = vld [vmem:[%s710 + $0x34] sm:$0xf]
    %v725 = vld [vmem:[%s710 + $0x38] sm:$0xf]
    %v726 = vld [vmem:[%s710 + $0x3c] sm:$0xf]
    %v727 = vld [vmem:[%s710 + $0x40] sm:$0xf]
    %v728 = vld [vmem:[%s710 + $0x44] sm:$0xf]
    %v729 = vld [vmem:[%s710 + $0x48] sm:$0xf]
    %v730 = vld [vmem:[%s710 + $0x4c] sm:$0xf]
    %v731 = vld [vmem:[%s710 + $0x50] sm:$0xf]
    %v732 = vld [vmem:[%s710 + $0x54] sm:$0xf]
    %v733 = vld [vmem:[%s710 + $0x58] sm:$0xf]
    %v734 = vld [vmem:[%s710 + $0x5c] sm:$0xf]
    %v735 = vld [vmem:[%s710 + $0x60] sm:$0xf]
    %v736 = vld [vmem:[%s710 + $0x64] sm:$0xf]
    %v737 = vld [vmem:[%s710 + $0x68] sm:$0xf]
    %v738 = vld [vmem:[%s710 + $0x6c] sm:$0xf]
    %v739 = vld [vmem:[%s710 + $0x70] sm:$0xf]
    %v740 = vld [vmem:[%s710 + $0x74] sm:$0xf]
    %v741 = vld [vmem:[%s710 + $0x78] sm:$0xf]
    %v742 = vld [vmem:[%s710 + $0x7c] sm:$0xf]
    %v743 = vld [vmem:[%s710 + $0x80] sm:$0xf]
    %v744 = vld [vmem:[%s710 + $0x84] sm:$0xf]
    %v745 = vld [vmem:[%s710 + $0x88] sm:$0xf]
    %v746 = vld [vmem:[%s710 + $0x8c] sm:$0xf]
    %v747 = vld [vmem:[%s710 + $0x90] sm:$0xf]
    %v748 = vld [vmem:[%s710 + $0x94] sm:$0xf]
    %v749 = vld [vmem:[%s710 + $0x98] sm:$0xf]
    %v750 = vld [vmem:[%s710 + $0x9c] sm:$0xf]
    %v751 = vld [vmem:[%s710 + $0xa0] sm:$0xf]
    %v752 = vld [vmem:[%s710 + $0xa4] sm:$0xf]
    %v753 = vld [vmem:[%s710 + $0xa8] sm:$0xf]
    %v754 = vld [vmem:[%s710 + $0xac] sm:$0xf]
    %v755 = vld [vmem:[%s710 + $0xb0] sm:$0xf]
    %v756 = vld [vmem:[%s710 + $0xb4] sm:$0xf]
    %v757 = vld [vmem:[%s710 + $0xb8] sm:$0xf]
    %v758 = vld [vmem:[%s710 + $0xbc] sm:$0xf]
    %v807 = vunpack.c.l.b16 %v711
    %v808 = vunpack.c.l.b16 %v712
    %v809 = vunpack.c.l.b16 %v713
    %v810 = vunpack.c.l.b16 %v714
    %v811 = vunpack.c.l.b16 %v715
    %v812 = vunpack.c.l.b16 %v716
    %v813 = vunpack.c.l.b16 %v717
    %v814 = vunpack.c.l.b16 %v718
    %v815 = vunpack.c.l.b16 %v719
    %v816 = vunpack.c.l.b16 %v720
    %v817 = vunpack.c.l.b16 %v721
    %v818 = vunpack.c.l.b16 %v722
    %v819 = vunpack.c.l.b16 %v723
    %v820 = vunpack.c.l.b16 %v724
    %v821 = vunpack.c.l.b16 %v725
    %v822 = vunpack.c.l.b16 %v726
    %v823 = vunpack.c.l.b16 %v727
    %v824 = vunpack.c.l.b16 %v728
    %v825 = vunpack.c.l.b16 %v729
    %v826 = vunpack.c.l.b16 %v730
    %v827 = vunpack.c.l.b16 %v731
    %v828 = vunpack.c.l.b16 %v732
    %v829 = vunpack.c.l.b16 %v733
    %v830 = vunpack.c.l.b16 %v734
    %v831 = vunpack.c.l.b16 %v735
    %v832 = vunpack.c.l.b16 %v736
    %v833 = vunpack.c.l.b16 %v737
    %v834 = vunpack.c.l.b16 %v738
    %v835 = vunpack.c.l.b16 %v739
    %v836 = vunpack.c.l.b16 %v740
    %v837 = vunpack.c.l.b16 %v741
    %v838 = vunpack.c.l.b16 %v742
    %v839 = vunpack.c.l.b16 %v743
    %v840 = vunpack.c.l.b16 %v744
    %v841 = vunpack.c.l.b16 %v745
    %v842 = vunpack.c.l.b16 %v746
    %v843 = vunpack.c.l.b16 %v747
    %v844 = vunpack.c.l.b16 %v748
    %v845 = vunpack.c.l.b16 %v749
    %v846 = vunpack.c.l.b16 %v750
    %v847 = vunpack.c.l.b16 %v751
    %v848 = vunpack.c.l.b16 %v752
    %v849 = vunpack.c.l.b16 %v753
    %v850 = vunpack.c.l.b16 %v754
    %v851 = vunpack.c.l.b16 %v755
    %v852 = vunpack.c.l.b16 %v756
    %v853 = vunpack.c.l.b16 %v757
    %v854 = vunpack.c.l.b16 %v758
    %v855 = vpack.c.b16 %v808, %v807
    %v856 = vpack.c.b16 %v810, %v809
    %v857 = vpack.c.b16 %v812, %v811
    %v858 = vpack.c.b16 %v814, %v813
    %v859 = vpack.c.b16 %v816, %v815
    %v860 = vpack.c.b16 %v818, %v817
    %v861 = vpack.c.b16 %v820, %v819
    %v862 = vpack.c.b16 %v822, %v821
    %v863 = vpack.c.b16 %v824, %v823
    %v864 = vpack.c.b16 %v826, %v825
    %v865 = vpack.c.b16 %v828, %v827
    %v866 = vpack.c.b16 %v830, %v829
    %v867 = vpack.c.b16 %v832, %v831
    %v868 = vpack.c.b16 %v834, %v833
    %v869 = vpack.c.b16 %v836, %v835
    %v870 = vpack.c.b16 %v838, %v837
    %v871 = vpack.c.b16 %v840, %v839
    %v872 = vpack.c.b16 %v842, %v841
    %v873 = vpack.c.b16 %v844, %v843
    %v874 = vpack.c.b16 %v846, %v845
    %v875 = vpack.c.b16 %v848, %v847
    %v876 = vpack.c.b16 %v850, %v849
    %v877 = vpack.c.b16 %v852, %v851
    %v878 = vpack.c.b16 %v854, %v853
    %903 = vmatpush.bf16.msra.mxu0 %v862
    %904 = vmatpush.bf16.msra.mxu0 %v861
    %905 = vmatpush.bf16.msra.mxu0 %v860
    %906 = vmatpush.bf16.msra.mxu0 %v859
    %907 = vmatpush.bf16.msra.mxu0 %v858
    %908 = vmatpush.bf16.msra.mxu0 %v857
    %909 = vmatpush.bf16.msra.mxu0 %v856
    %910 = vmatpush.bf16.msra.mxu0 %v855
    %911 = vmatmul.bf16.gmra.mxu0 %v702
    %v912 = vpop.f32.mrf.mxu0
    %v913 = vadd.f32 %v382, %v912
    %v914 = vpop.f32.mrf.mxu0
    %v915 = vadd.f32 %v384, %v914
    %916 = vdwg.mxu0
    %917 = vmatpush.bf16.msra.mxu0 %v870
    %918 = vmatpush.bf16.msra.mxu0 %v869
    %919 = vmatpush.bf16.msra.mxu0 %v868
    %920 = vmatpush.bf16.msra.mxu0 %v867
    %921 = vmatpush.bf16.msra.mxu0 %v866
    %922 = vmatpush.bf16.msra.mxu0 %v865
    %923 = vmatpush.bf16.msra.mxu0 %v864
    %924 = vmatpush.bf16.msra.mxu0 %v863
    %925 = vmatmul.bf16.gmra.mxu0 %v702
    %v926 = vpop.f32.mrf.mxu0
    %v927 = vadd.f32 %v913, %v926
    %v928 = vpop.f32.mrf.mxu0
    %v929 = vadd.f32 %v915, %v928
    %930 = vdwg.mxu0
    %931 = vmatpush.bf16.msra.mxu0 %v878
    %932 = vmatpush.bf16.msra.mxu0 %v877
    %933 = vmatpush.bf16.msra.mxu0 %v876
    %934 = vmatpush.bf16.msra.mxu0 %v875
    %935 = vmatpush.bf16.msra.mxu0 %v874
    %936 = vmatpush.bf16.msra.mxu0 %v873
    %937 = vmatpush.bf16.msra.mxu0 %v872
    %938 = vmatpush.bf16.msra.mxu0 %v871
    %939 = vmatmul.bf16.gmra.mxu0 %v708
    %v940 = vpop.f32.mrf.mxu0
    %v941 = vadd.f32 %v927, %v940
    %v942 = vpop.f32.mrf.mxu0
    %v943 = vadd.f32 %v929, %v942
    %944 = vdwg.mxu0
    %v945 = vmax.f32 %v941, 0.0
    %v946 = vmax.f32 %v943, 0.0
    %947 = vst [vmem:[#allocation10 + $0x10] sm:$0xff] %v945
    %948 = vst [vmem:[#allocation10 + $0x40] sm:$0xff] %v946
    %v949 = vpack.c.bf16 %v945, %v945
    %v950 = vpack.c.bf16 %v946, %v946
    %v951 = vunpack.c.l.bf16 %v949
    %v952 = vunpack.c.l.bf16 %v950
    %v953 = vsub.f32 %v945, %v951
    %v954 = vsub.f32 %v946, %v952
    %v955 = vpack.c.bf16 %v953, %v953
    %v956 = vpack.c.bf16 %v954, %v954
    %v959 = vunpack.c.l.b16 %v949
    %v960 = vunpack.c.l.b16 %v950
    %v961 = vpack.c.b16 %v960, %v959
    %v965 = vunpack.c.l.b16 %v955
    %v966 = vunpack.c.l.b16 %v956
    %v967 = vpack.c.b16 %v966, %v965
    %s969 = scalar_lea.vmem [#allocation8], 384
    %v970 = vld [vmem:[%s969] sm:$0xf]
    %v971 = vld [vmem:[%s969 + $0x4] sm:$0xf]
    %v972 = vld [vmem:[%s969 + $0x8] sm:$0xf]
    %v973 = vld [vmem:[%s969 + $0xc] sm:$0xf]
    %v974 = vld [vmem:[%s969 + $0x10] sm:$0xf]
    %v975 = vld [vmem:[%s969 + $0x14] sm:$0xf]
    %v976 = vld [vmem:[%s969 + $0x18] sm:$0xf]
    %v977 = vld [vmem:[%s969 + $0x1c] sm:$0xf]
    %v978 = vld [vmem:[%s969 + $0x20] sm:$0xf]
    %v979 = vld [vmem:[%s969 + $0x24] sm:$0xf]
    %v980 = vld [vmem:[%s969 + $0x28] sm:$0xf]
    %v981 = vld [vmem:[%s969 + $0x2c] sm:$0xf]
    %v982 = vld [vmem:[%s969 + $0x30] sm:$0xf]
    %v983 = vld [vmem:[%s969 + $0x34] sm:$0xf]
    %v984 = vld [vmem:[%s969 + $0x38] sm:$0xf]
    %v985 = vld [vmem:[%s969 + $0x3c] sm:$0xf]
    %v986 = vld [vmem:[%s969 + $0x40] sm:$0xf]
    %v987 = vld [vmem:[%s969 + $0x44] sm:$0xf]
    %v988 = vld [vmem:[%s969 + $0x48] sm:$0xf]
    %v989 = vld [vmem:[%s969 + $0x4c] sm:$0xf]
    %v990 = vld [vmem:[%s969 + $0x50] sm:$0xf]
    %v991 = vld [vmem:[%s969 + $0x54] sm:$0xf]
    %v992 = vld [vmem:[%s969 + $0x58] sm:$0xf]
    %v993 = vld [vmem:[%s969 + $0x5c] sm:$0xf]
    %v994 = vld [vmem:[%s969 + $0x60] sm:$0xf]
    %v995 = vld [vmem:[%s969 + $0x64] sm:$0xf]
    %v996 = vld [vmem:[%s969 + $0x68] sm:$0xf]
    %v997 = vld [vmem:[%s969 + $0x6c] sm:$0xf]
    %v998 = vld [vmem:[%s969 + $0x70] sm:$0xf]
    %v999 = vld [vmem:[%s969 + $0x74] sm:$0xf]
    %v1000 = vld [vmem:[%s969 + $0x78] sm:$0xf]
    %v1001 = vld [vmem:[%s969 + $0x7c] sm:$0xf]
    %v1002 = vld [vmem:[%s969 + $0x80] sm:$0xf]
    %v1003 = vld [vmem:[%s969 + $0x84] sm:$0xf]
    %v1004 = vld [vmem:[%s969 + $0x88] sm:$0xf]
    %v1005 = vld [vmem:[%s969 + $0x8c] sm:$0xf]
    %v1006 = vld [vmem:[%s969 + $0x90] sm:$0xf]
    %v1007 = vld [vmem:[%s969 + $0x94] sm:$0xf]
    %v1008 = vld [vmem:[%s969 + $0x98] sm:$0xf]
    %v1009 = vld [vmem:[%s969 + $0x9c] sm:$0xf]
    %v1010 = vld [vmem:[%s969 + $0xa0] sm:$0xf]
    %v1011 = vld [vmem:[%s969 + $0xa4] sm:$0xf]
    %v1012 = vld [vmem:[%s969 + $0xa8] sm:$0xf]
    %v1013 = vld [vmem:[%s969 + $0xac] sm:$0xf]
    %v1014 = vld [vmem:[%s969 + $0xb0] sm:$0xf]
    %v1015 = vld [vmem:[%s969 + $0xb4] sm:$0xf]
    %v1016 = vld [vmem:[%s969 + $0xb8] sm:$0xf]
    %v1017 = vld [vmem:[%s969 + $0xbc] sm:$0xf]
    %v1066 = vunpack.c.l.b16 %v970
    %v1067 = vunpack.c.l.b16 %v971
    %v1068 = vunpack.c.l.b16 %v972
    %v1069 = vunpack.c.l.b16 %v973
    %v1070 = vunpack.c.l.b16 %v974
    %v1071 = vunpack.c.l.b16 %v975
    %v1072 = vunpack.c.l.b16 %v976
    %v1073 = vunpack.c.l.b16 %v977
    %v1074 = vunpack.c.l.b16 %v978
    %v1075 = vunpack.c.l.b16 %v979
    %v1076 = vunpack.c.l.b16 %v980
    %v1077 = vunpack.c.l.b16 %v981
    %v1078 = vunpack.c.l.b16 %v982
    %v1079 = vunpack.c.l.b16 %v983
    %v1080 = vunpack.c.l.b16 %v984
    %v1081 = vunpack.c.l.b16 %v985
    %v1082 = vunpack.c.l.b16 %v986
    %v1083 = vunpack.c.l.b16 %v987
    %v1084 = vunpack.c.l.b16 %v988
    %v1085 = vunpack.c.l.b16 %v989
    %v1086 = vunpack.c.l.b16 %v990
    %v1087 = vunpack.c.l.b16 %v991
    %v1088 = vunpack.c.l.b16 %v992
    %v1089 = vunpack.c.l.b16 %v993
    %v1090 = vunpack.c.l.b16 %v994
    %v1091 = vunpack.c.l.b16 %v995
    %v1092 = vunpack.c.l.b16 %v996
    %v1093 = vunpack.c.l.b16 %v997
    %v1094 = vunpack.c.l.b16 %v998
    %v1095 = vunpack.c.l.b16 %v999
    %v1096 = vunpack.c.l.b16 %v1000
    %v1097 = vunpack.c.l.b16 %v1001
    %v1098 = vunpack.c.l.b16 %v1002
    %v1099 = vunpack.c.l.b16 %v1003
    %v1100 = vunpack.c.l.b16 %v1004
    %v1101 = vunpack.c.l.b16 %v1005
    %v1102 = vunpack.c.l.b16 %v1006
    %v1103 = vunpack.c.l.b16 %v1007
    %v1104 = vunpack.c.l.b16 %v1008
    %v1105 = vunpack.c.l.b16 %v1009
    %v1106 = vunpack.c.l.b16 %v1010
    %v1107 = vunpack.c.l.b16 %v1011
    %v1108 = vunpack.c.l.b16 %v1012
    %v1109 = vunpack.c.l.b16 %v1013
    %v1110 = vunpack.c.l.b16 %v1014
    %v1111 = vunpack.c.l.b16 %v1015
    %v1112 = vunpack.c.l.b16 %v1016
    %v1113 = vunpack.c.l.b16 %v1017
    %v1114 = vpack.c.b16 %v1067, %v1066
    %v1115 = vpack.c.b16 %v1069, %v1068
    %v1116 = vpack.c.b16 %v1071, %v1070
    %v1117 = vpack.c.b16 %v1073, %v1072
    %v1118 = vpack.c.b16 %v1075, %v1074
    %v1119 = vpack.c.b16 %v1077, %v1076
    %v1120 = vpack.c.b16 %v1079, %v1078
    %v1121 = vpack.c.b16 %v1081, %v1080
    %v1122 = vpack.c.b16 %v1083, %v1082
    %v1123 = vpack.c.b16 %v1085, %v1084
    %v1124 = vpack.c.b16 %v1087, %v1086
    %v1125 = vpack.c.b16 %v1089, %v1088
    %v1126 = vpack.c.b16 %v1091, %v1090
    %v1127 = vpack.c.b16 %v1093, %v1092
    %v1128 = vpack.c.b16 %v1095, %v1094
    %v1129 = vpack.c.b16 %v1097, %v1096
    %v1130 = vpack.c.b16 %v1099, %v1098
    %v1131 = vpack.c.b16 %v1101, %v1100
    %v1132 = vpack.c.b16 %v1103, %v1102
    %v1133 = vpack.c.b16 %v1105, %v1104
    %v1134 = vpack.c.b16 %v1107, %v1106
    %v1135 = vpack.c.b16 %v1109, %v1108
    %v1136 = vpack.c.b16 %v1111, %v1110
    %v1137 = vpack.c.b16 %v1113, %v1112
    %1162 = vmatpush.bf16.msra.mxu0 %v1121
    %1163 = vmatpush.bf16.msra.mxu0 %v1120
    %1164 = vmatpush.bf16.msra.mxu0 %v1119
    %1165 = vmatpush.bf16.msra.mxu0 %v1118
    %1166 = vmatpush.bf16.msra.mxu0 %v1117
    %1167 = vmatpush.bf16.msra.mxu0 %v1116
    %1168 = vmatpush.bf16.msra.mxu0 %v1115
    %1169 = vmatpush.bf16.msra.mxu0 %v1114
    %1170 = vmatmul.bf16.gmra.mxu0 %v961
    %v1171 = vpop.f32.mrf.mxu0
    %v1172 = vadd.f32 %v396, %v1171
    %v1173 = vpop.f32.mrf.mxu0
    %v1174 = vadd.f32 %v398, %v1173
    %1175 = vdwg.mxu0
    %1176 = vmatpush.bf16.msra.mxu0 %v1129
    %1177 = vmatpush.bf16.msra.mxu0 %v1128
    %1178 = vmatpush.bf16.msra.mxu0 %v1127
    %1179 = vmatpush.bf16.msra.mxu0 %v1126
    %1180 = vmatpush.bf16.msra.mxu0 %v1125
    %1181 = vmatpush.bf16.msra.mxu0 %v1124
    %1182 = vmatpush.bf16.msra.mxu0 %v1123
    %1183 = vmatpush.bf16.msra.mxu0 %v1122
    %1184 = vmatmul.bf16.gmra.mxu0 %v961
    %v1185 = vpop.f32.mrf.mxu0
    %v1186 = vadd.f32 %v1172, %v1185
    %v1187 = vpop.f32.mrf.mxu0
    %v1188 = vadd.f32 %v1174, %v1187
    %1189 = vdwg.mxu0
    %1190 = vmatpush.bf16.msra.mxu0 %v1137
    %1191 = vmatpush.bf16.msra.mxu0 %v1136
    %1192 = vmatpush.bf16.msra.mxu0 %v1135
    %1193 = vmatpush.bf16.msra.mxu0 %v1134
    %1194 = vmatpush.bf16.msra.mxu0 %v1133
    %1195 = vmatpush.bf16.msra.mxu0 %v1132
    %1196 = vmatpush.bf16.msra.mxu0 %v1131
    %1197 = vmatpush.bf16.msra.mxu0 %v1130
    %1198 = vmatmul.bf16.gmra.mxu0 %v967
    %v1199 = vpop.f32.mrf.mxu0
    %v1200 = vadd.f32 %v1186, %v1199
    %v1201 = vpop.f32.mrf.mxu0
    %v1202 = vadd.f32 %v1188, %v1201
    %1203 = vdwg.mxu0
    %v1204 = vmax.f32 %v1200, 0.0
    %v1205 = vmax.f32 %v1202, 0.0
    %1206 = vst [vmem:[#allocation10 + $0x18] sm:$0xff] %v1204
    %1207 = vst [vmem:[#allocation10 + $0x48] sm:$0xff] %v1205
    %v1208 = vpack.c.bf16 %v1204, %v1204
    %v1209 = vpack.c.bf16 %v1205, %v1205
    %v1210 = vunpack.c.l.bf16 %v1208
    %v1211 = vunpack.c.l.bf16 %v1209
    %v1212 = vsub.f32 %v1204, %v1210
    %v1213 = vsub.f32 %v1205, %v1211
    %v1214 = vpack.c.bf16 %v1212, %v1212
    %v1215 = vpack.c.bf16 %v1213, %v1213
    %v1218 = vunpack.c.l.b16 %v1208
    %v1219 = vunpack.c.l.b16 %v1209
    %v1220 = vpack.c.b16 %v1219, %v1218
    %v1224 = vunpack.c.l.b16 %v1214
    %v1225 = vunpack.c.l.b16 %v1215
    %v1226 = vpack.c.b16 %v1225, %v1224
    %s1228 = scalar_lea.vmem [#allocation8], 576
    %v1229 = vld [vmem:[%s1228] sm:$0xf]
    %v1230 = vld [vmem:[%s1228 + $0x4] sm:$0xf]
    %v1231 = vld [vmem:[%s1228 + $0x8] sm:$0xf]
    %v1232 = vld [vmem:[%s1228 + $0xc] sm:$0xf]
    %v1233 = vld [vmem:[%s1228 + $0x10] sm:$0xf]
    %v1234 = vld [vmem:[%s1228 + $0x14] sm:$0xf]
    %v1235 = vld [vmem:[%s1228 + $0x18] sm:$0xf]
    %v1236 = vld [vmem:[%s1228 + $0x1c] sm:$0xf]
    %v1237 = vld [vmem:[%s1228 + $0x20] sm:$0xf]
    %v1238 = vld [vmem:[%s1228 + $0x24] sm:$0xf]
    %v1239 = vld [vmem:[%s1228 + $0x28] sm:$0xf]
    %v1240 = vld [vmem:[%s1228 + $0x2c] sm:$0xf]
    %v1241 = vld [vmem:[%s1228 + $0x30] sm:$0xf]
    %v1242 = vld [vmem:[%s1228 + $0x34] sm:$0xf]
    %v1243 = vld [vmem:[%s1228 + $0x38] sm:$0xf]
    %v1244 = vld [vmem:[%s1228 + $0x3c] sm:$0xf]
    %v1245 = vld [vmem:[%s1228 + $0x40] sm:$0xf]
    %v1246 = vld [vmem:[%s1228 + $0x44] sm:$0xf]
    %v1247 = vld [vmem:[%s1228 + $0x48] sm:$0xf]
    %v1248 = vld [vmem:[%s1228 + $0x4c] sm:$0xf]
    %v1249 = vld [vmem:[%s1228 + $0x50] sm:$0xf]
    %v1250 = vld [vmem:[%s1228 + $0x54] sm:$0xf]
    %v1251 = vld [vmem:[%s1228 + $0x58] sm:$0xf]
    %v1252 = vld [vmem:[%s1228 + $0x5c] sm:$0xf]
    %v1253 = vld [vmem:[%s1228 + $0x60] sm:$0xf]
    %v1254 = vld [vmem:[%s1228 + $0x64] sm:$0xf]
    %v1255 = vld [vmem:[%s1228 + $0x68] sm:$0xf]
    %v1256 = vld [vmem:[%s1228 + $0x6c] sm:$0xf]
    %v1257 = vld [vmem:[%s1228 + $0x70] sm:$0xf]
    %v1258 = vld [vmem:[%s1228 + $0x74] sm:$0xf]
    %v1259 = vld [vmem:[%s1228 + $0x78] sm:$0xf]
    %v1260 = vld [vmem:[%s1228 + $0x7c] sm:$0xf]
    %v1261 = vld [vmem:[%s1228 + $0x80] sm:$0xf]
    %v1262 = vld [vmem:[%s1228 + $0x84] sm:$0xf]
    %v1263 = vld [vmem:[%s1228 + $0x88] sm:$0xf]
    %v1264 = vld [vmem:[%s1228 + $0x8c] sm:$0xf]
    %v1265 = vld [vmem:[%s1228 + $0x90] sm:$0xf]
    %v1266 = vld [vmem:[%s1228 + $0x94] sm:$0xf]
    %v1267 = vld [vmem:[%s1228 + $0x98] sm:$0xf]
    %v1268 = vld [vmem:[%s1228 + $0x9c] sm:$0xf]
    %v1269 = vld [vmem:[%s1228 + $0xa0] sm:$0xf]
    %v1270 = vld [vmem:[%s1228 + $0xa4] sm:$0xf]
    %v1271 = vld [vmem:[%s1228 + $0xa8] sm:$0xf]
    %v1272 = vld [vmem:[%s1228 + $0xac] sm:$0xf]
    %v1273 = vld [vmem:[%s1228 + $0xb0] sm:$0xf]
    %v1274 = vld [vmem:[%s1228 + $0xb4] sm:$0xf]
    %v1275 = vld [vmem:[%s1228 + $0xb8] sm:$0xf]
    %v1276 = vld [vmem:[%s1228 + $0xbc] sm:$0xf]
    %v1325 = vunpack.c.l.b16 %v1229
    %v1326 = vunpack.c.l.b16 %v1230
    %v1327 = vunpack.c.l.b16 %v1231
    %v1328 = vunpack.c.l.b16 %v1232
    %v1329 = vunpack.c.l.b16 %v1233
    %v1330 = vunpack.c.l.b16 %v1234
    %v1331 = vunpack.c.l.b16 %v1235
    %v1332 = vunpack.c.l.b16 %v1236
    %v1333 = vunpack.c.l.b16 %v1237
    %v1334 = vunpack.c.l.b16 %v1238
    %v1335 = vunpack.c.l.b16 %v1239
    %v1336 = vunpack.c.l.b16 %v1240
    %v1337 = vunpack.c.l.b16 %v1241
    %v1338 = vunpack.c.l.b16 %v1242
    %v1339 = vunpack.c.l.b16 %v1243
    %v1340 = vunpack.c.l.b16 %v1244
    %v1341 = vunpack.c.l.b16 %v1245
    %v1342 = vunpack.c.l.b16 %v1246
    %v1343 = vunpack.c.l.b16 %v1247
    %v1344 = vunpack.c.l.b16 %v1248
    %v1345 = vunpack.c.l.b16 %v1249
    %v1346 = vunpack.c.l.b16 %v1250
    %v1347 = vunpack.c.l.b16 %v1251
    %v1348 = vunpack.c.l.b16 %v1252
    %v1349 = vunpack.c.l.b16 %v1253
    %v1350 = vunpack.c.l.b16 %v1254
    %v1351 = vunpack.c.l.b16 %v1255
    %v1352 = vunpack.c.l.b16 %v1256
    %v1353 = vunpack.c.l.b16 %v1257
    %v1354 = vunpack.c.l.b16 %v1258
    %v1355 = vunpack.c.l.b16 %v1259
    %v1356 = vunpack.c.l.b16 %v1260
    %v1357 = vunpack.c.l.b16 %v1261
    %v1358 = vunpack.c.l.b16 %v1262
    %v1359 = vunpack.c.l.b16 %v1263
    %v1360 = vunpack.c.l.b16 %v1264
    %v1361 = vunpack.c.l.b16 %v1265
    %v1362 = vunpack.c.l.b16 %v1266
    %v1363 = vunpack.c.l.b16 %v1267
    %v1364 = vunpack.c.l.b16 %v1268
    %v1365 = vunpack.c.l.b16 %v1269
    %v1366 = vunpack.c.l.b16 %v1270
    %v1367 = vunpack.c.l.b16 %v1271
    %v1368 = vunpack.c.l.b16 %v1272
    %v1369 = vunpack.c.l.b16 %v1273
    %v1370 = vunpack.c.l.b16 %v1274
    %v1371 = vunpack.c.l.b16 %v1275
    %v1372 = vunpack.c.l.b16 %v1276
    %v1373 = vpack.c.b16 %v1326, %v1325
    %v1374 = vpack.c.b16 %v1328, %v1327
    %v1375 = vpack.c.b16 %v1330, %v1329
    %v1376 = vpack.c.b16 %v1332, %v1331
    %v1377 = vpack.c.b16 %v1334, %v1333
    %v1378 = vpack.c.b16 %v1336, %v1335
    %v1379 = vpack.c.b16 %v1338, %v1337
    %v1380 = vpack.c.b16 %v1340, %v1339
    %v1381 = vpack.c.b16 %v1342, %v1341
    %v1382 = vpack.c.b16 %v1344, %v1343
    %v1383 = vpack.c.b16 %v1346, %v1345
    %v1384 = vpack.c.b16 %v1348, %v1347
    %v1385 = vpack.c.b16 %v1350, %v1349
    %v1386 = vpack.c.b16 %v1352, %v1351
    %v1387 = vpack.c.b16 %v1354, %v1353
    %v1388 = vpack.c.b16 %v1356, %v1355
    %v1389 = vpack.c.b16 %v1358, %v1357
    %v1390 = vpack.c.b16 %v1360, %v1359
    %v1391 = vpack.c.b16 %v1362, %v1361
    %v1392 = vpack.c.b16 %v1364, %v1363
    %v1393 = vpack.c.b16 %v1366, %v1365
    %v1394 = vpack.c.b16 %v1368, %v1367
    %v1395 = vpack.c.b16 %v1370, %v1369
    %v1396 = vpack.c.b16 %v1372, %v1371
    %1421 = vmatpush.bf16.msra.mxu0 %v1380
    %1422 = vmatpush.bf16.msra.mxu0 %v1379
    %1423 = vmatpush.bf16.msra.mxu0 %v1378
    %1424 = vmatpush.bf16.msra.mxu0 %v1377
    %1425 = vmatpush.bf16.msra.mxu0 %v1376
    %1426 = vmatpush.bf16.msra.mxu0 %v1375
    %1427 = vmatpush.bf16.msra.mxu0 %v1374
    %1428 = vmatpush.bf16.msra.mxu0 %v1373
    %1429 = vmatmul.bf16.gmra.mxu0 %v1220
    %v1430 = vpop.f32.mrf.mxu0
    %v1431 = vadd.f32 %v410, %v1430
    %v1432 = vpop.f32.mrf.mxu0
    %v1433 = vadd.f32 %v412, %v1432
    %1434 = vdwg.mxu0
    %1435 = vmatpush.bf16.msra.mxu0 %v1388
    %1436 = vmatpush.bf16.msra.mxu0 %v1387
    %1437 = vmatpush.bf16.msra.mxu0 %v1386
    %1438 = vmatpush.bf16.msra.mxu0 %v1385
    %1439 = vmatpush.bf16.msra.mxu0 %v1384
    %1440 = vmatpush.bf16.msra.mxu0 %v1383
    %1441 = vmatpush.bf16.msra.mxu0 %v1382
    %1442 = vmatpush.bf16.msra.mxu0 %v1381
    %1443 = vmatmul.bf16.gmra.mxu0 %v1220
    %v1444 = vpop.f32.mrf.mxu0
    %v1445 = vadd.f32 %v1431, %v1444
    %v1446 = vpop.f32.mrf.mxu0
    %v1447 = vadd.f32 %v1433, %v1446
    %1448 = vdwg.mxu0
    %1449 = vmatpush.bf16.msra.mxu0 %v1396
    %1450 = vmatpush.bf16.msra.mxu0 %v1395
    %1451 = vmatpush.bf16.msra.mxu0 %v1394
    %1452 = vmatpush.bf16.msra.mxu0 %v1393
    %1453 = vmatpush.bf16.msra.mxu0 %v1392
    %1454 = vmatpush.bf16.msra.mxu0 %v1391
    %1455 = vmatpush.bf16.msra.mxu0 %v1390
    %1456 = vmatpush.bf16.msra.mxu0 %v1389
    %1457 = vmatmul.bf16.gmra.mxu0 %v1226
    %v1458 = vpop.f32.mrf.mxu0
    %v1459 = vadd.f32 %v1445, %v1458
    %v1460 = vpop.f32.mrf.mxu0
    %v1461 = vadd.f32 %v1447, %v1460
    %1462 = vdwg.mxu0
    %v1463 = vmax.f32 %v1459, 0.0
    %v1464 = vmax.f32 %v1461, 0.0
    %1465 = vst [vmem:[#allocation10 + $0x20] sm:$0xff] %v1463
    %1466 = vst [vmem:[#allocation10 + $0x50] sm:$0xff] %v1464
    %v1467 = vpack.c.bf16 %v1463, %v1463
    %v1468 = vpack.c.bf16 %v1464, %v1464
    %v1469 = vunpack.c.l.bf16 %v1467
    %v1470 = vunpack.c.l.bf16 %v1468
    %v1471 = vsub.f32 %v1463, %v1469
    %v1472 = vsub.f32 %v1464, %v1470
    %v1473 = vpack.c.bf16 %v1471, %v1471
    %v1474 = vpack.c.bf16 %v1472, %v1472
    %v1477 = vunpack.c.l.b16 %v1467
    %v1478 = vunpack.c.l.b16 %v1468
    %v1479 = vpack.c.b16 %v1478, %v1477
    %v1483 = vunpack.c.l.b16 %v1473
    %v1484 = vunpack.c.l.b16 %v1474
    %v1485 = vpack.c.b16 %v1484, %v1483
    %s1487 = scalar_lea.vmem [#allocation8], 768
    %v1488 = vld [vmem:[%s1487] sm:$0xf]
    %v1489 = vld [vmem:[%s1487 + $0x4] sm:$0xf]
    %v1490 = vld [vmem:[%s1487 + $0x8] sm:$0xf]
    %v1491 = vld [vmem:[%s1487 + $0xc] sm:$0xf]
    %v1492 = vld [vmem:[%s1487 + $0x10] sm:$0xf]
    %v1493 = vld [vmem:[%s1487 + $0x14] sm:$0xf]
    %v1494 = vld [vmem:[%s1487 + $0x18] sm:$0xf]
    %v1495 = vld [vmem:[%s1487 + $0x1c] sm:$0xf]
    %v1496 = vld [vmem:[%s1487 + $0x20] sm:$0xf]
    %v1497 = vld [vmem:[%s1487 + $0x24] sm:$0xf]
    %v1498 = vld [vmem:[%s1487 + $0x28] sm:$0xf]
    %v1499 = vld [vmem:[%s1487 + $0x2c] sm:$0xf]
    %v1500 = vld [vmem:[%s1487 + $0x30] sm:$0xf]
    %v1501 = vld [vmem:[%s1487 + $0x34] sm:$0xf]
    %v1502 = vld [vmem:[%s1487 + $0x38] sm:$0xf]
    %v1503 = vld [vmem:[%s1487 + $0x3c] sm:$0xf]
    %v1504 = vld [vmem:[%s1487 + $0x40] sm:$0xf]
    %v1505 = vld [vmem:[%s1487 + $0x44] sm:$0xf]
    %v1506 = vld [vmem:[%s1487 + $0x48] sm:$0xf]
    %v1507 = vld [vmem:[%s1487 + $0x4c] sm:$0xf]
    %v1508 = vld [vmem:[%s1487 + $0x50] sm:$0xf]
    %v1509 = vld [vmem:[%s1487 + $0x54] sm:$0xf]
    %v1510 = vld [vmem:[%s1487 + $0x58] sm:$0xf]
    %v1511 = vld [vmem:[%s1487 + $0x5c] sm:$0xf]
    %v1512 = vld [vmem:[%s1487 + $0x60] sm:$0xf]
    %v1513 = vld [vmem:[%s1487 + $0x64] sm:$0xf]
    %v1514 = vld [vmem:[%s1487 + $0x68] sm:$0xf]
    %v1515 = vld [vmem:[%s1487 + $0x6c] sm:$0xf]
    %v1516 = vld [vmem:[%s1487 + $0x70] sm:$0xf]
    %v1517 = vld [vmem:[%s1487 + $0x74] sm:$0xf]
    %v1518 = vld [vmem:[%s1487 + $0x78] sm:$0xf]
    %v1519 = vld [vmem:[%s1487 + $0x7c] sm:$0xf]
    %v1520 = vld [vmem:[%s1487 + $0x80] sm:$0xf]
    %v1521 = vld [vmem:[%s1487 + $0x84] sm:$0xf]
    %v1522 = vld [vmem:[%s1487 + $0x88] sm:$0xf]
    %v1523 = vld [vmem:[%s1487 + $0x8c] sm:$0xf]
    %v1524 = vld [vmem:[%s1487 + $0x90] sm:$0xf]
    %v1525 = vld [vmem:[%s1487 + $0x94] sm:$0xf]
    %v1526 = vld [vmem:[%s1487 + $0x98] sm:$0xf]
    %v1527 = vld [vmem:[%s1487 + $0x9c] sm:$0xf]
    %v1528 = vld [vmem:[%s1487 + $0xa0] sm:$0xf]
    %v1529 = vld [vmem:[%s1487 + $0xa4] sm:$0xf]
    %v1530 = vld [vmem:[%s1487 + $0xa8] sm:$0xf]
    %v1531 = vld [vmem:[%s1487 + $0xac] sm:$0xf]
    %v1532 = vld [vmem:[%s1487 + $0xb0] sm:$0xf]
    %v1533 = vld [vmem:[%s1487 + $0xb4] sm:$0xf]
    %v1534 = vld [vmem:[%s1487 + $0xb8] sm:$0xf]
    %v1535 = vld [vmem:[%s1487 + $0xbc] sm:$0xf]
    %v1584 = vunpack.c.l.b16 %v1488
    %v1585 = vunpack.c.l.b16 %v1489
    %v1586 = vunpack.c.l.b16 %v1490
    %v1587 = vunpack.c.l.b16 %v1491
    %v1588 = vunpack.c.l.b16 %v1492
    %v1589 = vunpack.c.l.b16 %v1493
    %v1590 = vunpack.c.l.b16 %v1494
    %v1591 = vunpack.c.l.b16 %v1495
    %v1592 = vunpack.c.l.b16 %v1496
    %v1593 = vunpack.c.l.b16 %v1497
    %v1594 = vunpack.c.l.b16 %v1498
    %v1595 = vunpack.c.l.b16 %v1499
    %v1596 = vunpack.c.l.b16 %v1500
    %v1597 = vunpack.c.l.b16 %v1501
    %v1598 = vunpack.c.l.b16 %v1502
    %v1599 = vunpack.c.l.b16 %v1503
    %v1600 = vunpack.c.l.b16 %v1504
    %v1601 = vunpack.c.l.b16 %v1505
    %v1602 = vunpack.c.l.b16 %v1506
    %v1603 = vunpack.c.l.b16 %v1507
    %v1604 = vunpack.c.l.b16 %v1508
    %v1605 = vunpack.c.l.b16 %v1509
    %v1606 = vunpack.c.l.b16 %v1510
    %v1607 = vunpack.c.l.b16 %v1511
    %v1608 = vunpack.c.l.b16 %v1512
    %v1609 = vunpack.c.l.b16 %v1513
    %v1610 = vunpack.c.l.b16 %v1514
    %v1611 = vunpack.c.l.b16 %v1515
    %v1612 = vunpack.c.l.b16 %v1516
    %v1613 = vunpack.c.l.b16 %v1517
    %v1614 = vunpack.c.l.b16 %v1518
    %v1615 = vunpack.c.l.b16 %v1519
    %v1616 = vunpack.c.l.b16 %v1520
    %v1617 = vunpack.c.l.b16 %v1521
    %v1618 = vunpack.c.l.b16 %v1522
    %v1619 = vunpack.c.l.b16 %v1523
    %v1620 = vunpack.c.l.b16 %v1524
    %v1621 = vunpack.c.l.b16 %v1525
    %v1622 = vunpack.c.l.b16 %v1526
    %v1623 = vunpack.c.l.b16 %v1527
    %v1624 = vunpack.c.l.b16 %v1528
    %v1625 = vunpack.c.l.b16 %v1529
    %v1626 = vunpack.c.l.b16 %v1530
    %v1627 = vunpack.c.l.b16 %v1531
    %v1628 = vunpack.c.l.b16 %v1532
    %v1629 = vunpack.c.l.b16 %v1533
    %v1630 = vunpack.c.l.b16 %v1534
    %v1631 = vunpack.c.l.b16 %v1535
    %v1632 = vpack.c.b16 %v1585, %v1584
    %v1633 = vpack.c.b16 %v1587, %v1586
    %v1634 = vpack.c.b16 %v1589, %v1588
    %v1635 = vpack.c.b16 %v1591, %v1590
    %v1636 = vpack.c.b16 %v1593, %v1592
    %v1637 = vpack.c.b16 %v1595, %v1594
    %v1638 = vpack.c.b16 %v1597, %v1596
    %v1639 = vpack.c.b16 %v1599, %v1598
    %v1640 = vpack.c.b16 %v1601, %v1600
    %v1641 = vpack.c.b16 %v1603, %v1602
    %v1642 = vpack.c.b16 %v1605, %v1604
    %v1643 = vpack.c.b16 %v1607, %v1606
    %v1644 = vpack.c.b16 %v1609, %v1608
    %v1645 = vpack.c.b16 %v1611, %v1610
    %v1646 = vpack.c.b16 %v1613, %v1612
    %v1647 = vpack.c.b16 %v1615, %v1614
    %v1648 = vpack.c.b16 %v1617, %v1616
    %v1649 = vpack.c.b16 %v1619, %v1618
    %v1650 = vpack.c.b16 %v1621, %v1620
    %v1651 = vpack.c.b16 %v1623, %v1622
    %v1652 = vpack.c.b16 %v1625, %v1624
    %v1653 = vpack.c.b16 %v1627, %v1626
    %v1654 = vpack.c.b16 %v1629, %v1628
    %v1655 = vpack.c.b16 %v1631, %v1630
    %1680 = vmatpush.bf16.msra.mxu0 %v1639
    %1681 = vmatpush.bf16.msra.mxu0 %v1638
    %1682 = vmatpush.bf16.msra.mxu0 %v1637
    %1683 = vmatpush.bf16.msra.mxu0 %v1636
    %1684 = vmatpush.bf16.msra.mxu0 %v1635
    %1685 = vmatpush.bf16.msra.mxu0 %v1634
    %1686 = vmatpush.bf16.msra.mxu0 %v1633
    %1687 = vmatpush.bf16.msra.mxu0 %v1632
    %1688 = vmatmul.bf16.gmra.mxu0 %v1479
    %v1689 = vpop.f32.mrf.mxu0
    %v1690 = vadd.f32 %v424, %v1689
    %v1691 = vpop.f32.mrf.mxu0
    %v1692 = vadd.f32 %v426, %v1691
    %1693 = vdwg.mxu0
    %1694 = vmatpush.bf16.msra.mxu0 %v1647
    %1695 = vmatpush.bf16.msra.mxu0 %v1646
    %1696 = vmatpush.bf16.msra.mxu0 %v1645
    %1697 = vmatpush.bf16.msra.mxu0 %v1644
    %1698 = vmatpush.bf16.msra.mxu0 %v1643
    %1699 = vmatpush.bf16.msra.mxu0 %v1642
    %1700 = vmatpush.bf16.msra.mxu0 %v1641
    %1701 = vmatpush.bf16.msra.mxu0 %v1640
    %1702 = vmatmul.bf16.gmra.mxu0 %v1479
    %v1703 = vpop.f32.mrf.mxu0
    %v1704 = vadd.f32 %v1690, %v1703
    %v1705 = vpop.f32.mrf.mxu0
    %v1706 = vadd.f32 %v1692, %v1705
    %1707 = vdwg.mxu0
    %1708 = vmatpush.bf16.msra.mxu0 %v1655
    %1709 = vmatpush.bf16.msra.mxu0 %v1654
    %1710 = vmatpush.bf16.msra.mxu0 %v1653
    %1711 = vmatpush.bf16.msra.mxu0 %v1652
    %1712 = vmatpush.bf16.msra.mxu0 %v1651
    %1713 = vmatpush.bf16.msra.mxu0 %v1650
    %1714 = vmatpush.bf16.msra.mxu0 %v1649
    %1715 = vmatpush.bf16.msra.mxu0 %v1648
    %1716 = vmatmul.bf16.gmra.mxu0 %v1485
    %v1717 = vpop.f32.mrf.mxu0
    %v1718 = vadd.f32 %v1704, %v1717
    %v1719 = vpop.f32.mrf.mxu0
    %v1720 = vadd.f32 %v1706, %v1719
    %1721 = vdwg.mxu0
    %v1722 = vmax.f32 %v1718, 0.0
    %v1723 = vmax.f32 %v1720, 0.0
    %1724 = vst [vmem:[#allocation10 + $0x28] sm:$0xff] %v1722
    %1725 = vst [vmem:[#allocation10 + $0x58] sm:$0xff] %v1723
    // Predicated region
    $region34: #{tpu_custom_call.1} parent=1 // pred_check
      _
    $region35: #{tpu_custom_call.1} parent=1 // pred_check_branch
      %1727 = sbr.rel (0) target = $region37
    $region36: #{tpu_custom_call.1} parent=1 // pred_region
      %1729 = vsyncadd [#allocation4], 0
      %s1730 = sshll.u32 [#allocation10], 4
      %s1731 = int_to_ptr.vmem [resolvable:$true] %s1730
      %s1732 = sshll.u32 %s4, 4
      %s1733 = int_to_ptr.hbm [resolvable:$true] %s1732
      %1738 = dma.vmem_to_hbm [thread:$0]  %s1731, 1536, %s1733, [#allocation4], 768, 768, 48
    $region37: #{tpu_custom_call.1} parent=1 // pred_fallthru
      _
    // Predicated region
    $region38: #{tpu_custom_call.1} parent=1 // pred_check
      _
    $region39: #{tpu_custom_call.1} parent=1 // pred_check_branch
      %1740 = sbr.rel (0) target = $region41
    $region40: #{tpu_custom_call.1} parent=1 // pred_region
      %1742 = dma.done [#allocation4], 1536
    $region41: #{tpu_custom_call.1} parent=1 // pred_fallthru
      _
    %1743 = vsyncpa [#allocation3], 1
    %1744 = vsyncpa [#allocation6], 1
    %1745 = vsyncpa [#allocation9], 1
    %1746 = vsyncpa [#allocation4], 1

</llo_original>
